<compile_context>
chip_gen: v7x
topology: tpu7x:2x2x1
jax: 0.10.0
libtpu: 0.0.40
codegen_flags: <defaults>
</compile_context>

<pallas_src>
import functools

import jax
import jax.numpy as jnp
from jax.experimental import pallas as pl
from jax.experimental.pallas import tpu as pltpu


EMBEDDING_DIM = 16   # unused by forward (matches the PyTorch module attribute)
INPUT_DIM = 3
HIDDEN_DIM = 64
NUM_LAYERS = 1
PRED_LEN = 8
OUT_LANES = 128      # hidden2pos output padded 3 -> 128 so the final store is lane-dense


def _decoder_kernel(xh0_ref, c0_ref,
                    w0_ref, b0_ref,
                    wrec_ref, brec_ref,
                    wout_ref, bout_ref,
                    out_ref,
                    hbuf_ref,
                    *, pred_len: int, hidden_dim: int, matmul_dtype):
    """Full autoregressive decode in one kernel invocation (grid=()).

    xh0_ref  : (B, 3+H)    [x_last | h0], so step 0 is a single dot
    c0_ref   : (B, H)      initial cell state
    w0_ref   : (3+H, 4H)   [W_ih^T ; W_hh^T], gate cols permuted [i|f|o|g]
    b0_ref   : (1, 4H)     b_ih + b_hh, permuted
    wrec_ref : (H, 4H)     fused recurrence W_hh^T + W_lin^T W_ih^T, permuted
    brec_ref : (1, 4H)     fused recurrence bias b0 + b_lin W_ih^T, permuted
    wout_ref : (H, 128)    hidden2pos weights, lane-padded (cols 3.. are zero)
    bout_ref : (1, 128)    hidden2pos bias, lane-padded
    out_ref  : (pred_len, B, 128)
    hbuf_ref : (pred_len*B, H) scratch slab of per-step hidden states (f32)
    """
    H = hidden_dim
    B = c0_ref.shape[0]

    # ---- hoist weight/bias loads & broadcasts out of the unrolled loop ----
    w0 = w0_ref[...]                                       # (3+H, 4H)
    w_rec = wrec_ref[...]                                  # (H, 4H)
    b0 = jnp.broadcast_to(b0_ref[...], (B, 4 * H))         # (B, 4H)
    b_rec = jnp.broadcast_to(brec_ref[...], (B, 4 * H))    # (B, 4H)

    # c / h carried as plain locals -> stay in vregs across the unrolled loop.
    c = c0_ref[...]

    def gates_to_state(gates, c_prev):
        # Gate columns pre-permuted to [i | f | o | g].  With H=64 each half below
        # is exactly one 128-lane tile, so nonlinearities run on whole vregs (no
        # masked EUP ops); the extra tanh over the o-half rides the EUP slot.
        ifo = jax.nn.sigmoid(gates[:, :2 * H])             # [sig i | sig f]
        tile1 = gates[:, 2 * H:]                           # [  o   |   g  ]
        og_s = jax.nn.sigmoid(tile1)                       # [sig o |  ..  ]
        og_t = jnp.tanh(tile1)                             # [  ..  | tanh g]
        i_g = ifo[:, :H]
        f_g = ifo[:, H:]
        o_g = og_s[:, :H]
        g_g = og_t[:, H:]
        c_new = f_g * c_prev + i_g * g_g
        h_new = o_g * jnp.tanh(c_new)
        return h_new, c_new

    # ---- step 0: one dot over the stacked [x0 | h0] input ----
    gates = jnp.dot(xh0_ref[...].astype(matmul_dtype), w0,
                    preferred_element_type=jnp.float32) + b0
    h, c = gates_to_state(gates, c)
    h_mm = h.astype(matmul_dtype)
    hbuf_ref[0:B, :] = h

    # ---- steps 1..pred_len-1: feedback x_t = h W_lin^T + b_lin folded into
    #      w_rec / b_rec -> a single MXU dot per step on the serial chain. ----
    # TODO(synk): on v5e/v6e, if the bundle shows w_rec re-latched into MXU staging
    # every step, drive the MXU explicitly (pltpu.matmul_push_rhs once +
    # matmul_acc_lhs/matmul_pop per step) to drop the per-step weight load.
    for t in range(1, pred_len):
        gates = jnp.dot(h_mm, w_rec, preferred_element_type=jnp.float32) + b_rec
        h, c = gates_to_state(gates, c)
        h_mm = h.astype(matmul_dtype)
        hbuf_ref[t * B:(t + 1) * B, :] = h      # static-slice store, off the chain

    # ---- batched, lane-dense output projection + single full 3-D store ----
    h_all = hbuf_ref[...].astype(matmul_dtype)             # (pred_len*B, H)
    y = (jnp.dot(h_all, wout_ref[...], preferred_element_type=jnp.float32)
         + bout_ref[...])
    out_ref[...] = y.reshape(pred_len, B, out_ref.shape[-1]).astype(out_ref.dtype)


def _permute_gate_cols(m, hidden_dim):
    """Permute the 4H gate axis from PyTorch order [i|f|g|o] to [i|f|o|g]."""
    H = hidden_dim
    return jnp.concatenate(
        [m[..., 0:H], m[..., H:2 * H], m[..., 3 * H:4 * H], m[..., 2 * H:3 * H]],
        axis=-1)


def prepare_decoder_params(params, hidden_dim=HIDDEN_DIM, use_bf16_matmul=True):
    """One-time parameter preprocessing.  Call once at init and cache the result;
    decoder_forward then does no per-call weight glue."""
    H = hidden_dim
    HIGH = jax.lax.Precision.HIGHEST

    wih_t = params["w_ih"].T                                   # (3, 4H)
    whh_t = params["w_hh"].T                                   # (H, 4H)
    b = (params["b_ih"] + params["b_hh"]).reshape(1, 4 * H)    # (1, 4H)
    wlin_t = params["w_lin"].T                                 # (H, 3)
    blin = params["b_lin"].reshape(1, 3)                       # (1, 3)

    # Fold x_t = h_{t-1} @ W_lin^T + b_lin into the recurrence:
    #   gates_t = h_{t-1} @ (W_hh^T + W_lin^T W_ih^T) + (b + b_lin W_ih^T)
    w_rec = whh_t + jnp.dot(wlin_t, wih_t, precision=HIGH)     # (H, 4H)
    b_rec = b + jnp.dot(blin, wih_t, precision=HIGH)           # (1, 4H)

    # Stack [W_ih^T ; W_hh^T] so step 0 is a single dot over [x0 | h0].
    w0 = jnp.concatenate([wih_t, whh_t], axis=0)               # (3+H, 4H)

    # Gate-column permutation [i|f|g|o] -> [i|f|o|g].
    w0_p = _permute_gate_cols(w0, H)
    b_p = _permute_gate_cols(b, H)
    w_rec_p = _permute_gate_cols(w_rec, H)
    b_rec_p = _permute_gate_cols(b_rec, H)

    # Lane-padded output projection (3 -> OUT_LANES) for a lane-dense final store.
    w_out = jnp.zeros((H, OUT_LANES), jnp.float32).at[:, :3].set(wlin_t)
    b_out = jnp.zeros((1, OUT_LANES), jnp.float32).at[:, :3].set(blin)

    # bf16 matmul inputs by default (MXU-native on v5e/v6e/v7x); accumulation and
    # gate math stay f32.  For long pred_len where the fused-feedback rounding
    # through a bf16 w_rec matters, pass use_bf16_matmul=False.
    mm_dtype = jnp.bfloat16 if use_bf16_matmul else jnp.float32

    prepared = {
        "w0": w0_p.astype(mm_dtype),
        "b0": b_p.astype(jnp.float32),
        "w_rec": w_rec_p.astype(mm_dtype),
        "b_rec": b_rec_p.astype(jnp.float32),
        "w_out": w_out.astype(mm_dtype),
        "b_out": b_out,
    }
    return jax.block_until_ready(prepared)


def decoder_forward(obs_traj_rel, state_tuple, prepared,
                    pred_len=PRED_LEN, hidden_dim=HIDDEN_DIM):
    """JAX wrapper mirroring Decoder.forward.  `prepared` is the cached output of
    prepare_decoder_params; per-call work is slice + pad + concat + one pallas_call."""
    H = hidden_dim

    h0_full, c0_full = state_tuple            # each (num_layers=1, B, H)
    x0 = obs_traj_rel[-1]                     # (B, 3)
    h0 = h0_full[0]
    c0 = c0_full[0]
    B = x0.shape[0]

    xh0 = jnp.concatenate([x0, h0], axis=1)   # (B, 3+H)

    # Pad batch to a sublane multiple so every in-kernel store is tile-aligned.
    B_pad = ((B + 7) // 8) * 8
    pad = B_pad - B
    if pad:
        xh0 = jnp.pad(xh0, ((0, pad), (0, 0)))
        c0 = jnp.pad(c0, ((0, pad), (0, 0)))

    mm_dtype = prepared["w_rec"].dtype

    kernel = functools.partial(_decoder_kernel,
                               pred_len=pred_len, hidden_dim=H,
                               matmul_dtype=mm_dtype)

    in_arrays = (xh0, c0,
                 prepared["w0"], prepared["b0"],
                 prepared["w_rec"], prepared["b_rec"],
                 prepared["w_out"], prepared["b_out"])

    # Advisory cost estimate so XLA overlaps this tiny custom call with neighbors.
    flops = (2 * B_pad * (H + 3) * 4 * H
             + (pred_len - 1) * 2 * B_pad * H * 4 * H
             + 2 * pred_len * B_pad * H * OUT_LANES)
    transcendentals = pred_len * B_pad * 6 * H
    bytes_accessed = (pred_len * B_pad * OUT_LANES * 4
                      + sum(int(a.size) * a.dtype.itemsize for a in in_arrays))

    vmem = pl.BlockSpec(memory_space=pltpu.MemorySpace.VMEM)

    # TODO(synk): for large trajectory batches, add a batch-tile grid axis (128+ row
    # tiles) with dimension_semantics=("parallel",) so both v7x TensorCores split the
    # batch and the MXU M-occupancy fills up; unnecessary at these shapes.
    out = pl.pallas_call(
        kernel,
        out_shape=jax.ShapeDtypeStruct((pred_len, B_pad, OUT_LANES), jnp.float32),
        in_specs=[vmem] * len(in_arrays),
        out_specs=vmem,
        scratch_shapes=[pltpu.VMEM((pred_len * B_pad, H), jnp.float32)],
        cost_estimate=pl.CostEstimate(flops=flops,
                                      transcendentals=transcendentals,
                                      bytes_accessed=bytes_accessed),
    )(*in_arrays)

    # Keep the real batch rows and the 3 position lanes (no intermediate reshape).
    return out[:, :B, :3]


def _init_params(key, hidden_dim=HIDDEN_DIM, input_dim=INPUT_DIM):
    """Deterministic init mimicking PyTorch's uniform(-1/sqrt(H), 1/sqrt(H))."""
    k = 1.0 / jnp.sqrt(jnp.float32(hidden_dim))
    keys = jax.random.split(key, 6)
    u = lambda kk, shape: jax.random.uniform(kk, shape, jnp.float32, -k, k)
    return {
        "w_ih": u(keys[0], (4 * hidden_dim, input_dim)),   # LSTM weight_ih_l0
        "w_hh": u(keys[1], (4 * hidden_dim, hidden_dim)),  # LSTM weight_hh_l0
        "b_ih": u(keys[2], (4 * hidden_dim,)),             # LSTM bias_ih_l0
        "b_hh": u(keys[3], (4 * hidden_dim,)),             # LSTM bias_hh_l0
        "w_lin": u(keys[4], (input_dim, hidden_dim)),      # hidden2pos.weight
        "b_lin": u(keys[5], (input_dim,)),                 # hidden2pos.bias
    }


def _reference_forward(obs_traj_rel, state_tuple, params,
                       pred_len=PRED_LEN, hidden_dim=HIDDEN_DIM):
    """Pure-JAX reference matching the PyTorch semantics."""
    HIGH = jax.lax.Precision.HIGHEST
    h, c = state_tuple[0][0], state_tuple[1][0]
    x = obs_traj_rel[-1]
    b = params["b_ih"] + params["b_hh"]
    outs = []
    H = hidden_dim
    for _ in range(pred_len):
        gates = (jnp.dot(x, params["w_ih"].T, precision=HIGH)
                 + jnp.dot(h, params["w_hh"].T, precision=HIGH) + b)
        i_g = jax.nn.sigmoid(gates[:, 0 * H:1 * H])
        f_g = jax.nn.sigmoid(gates[:, 1 * H:2 * H])
        g_g = jnp.tanh(gates[:, 2 * H:3 * H])
        o_g = jax.nn.sigmoid(gates[:, 3 * H:4 * H])
        c = f_g * c + i_g * g_g
        h = o_g * jnp.tanh(c)
        x = jnp.dot(h, params["w_lin"].T, precision=HIGH) + params["b_lin"]
        outs.append(x)
    return jnp.stack(outs, axis=0)


if __name__ == "__main__":
    key = jax.random.PRNGKey(0)
    k_param, k_x, k_h, k_c = jax.random.split(key, 4)

    batch = 4
    seq_len = 8

    params = _init_params(k_param)
    obs_traj_rel = jax.random.normal(k_x, (seq_len, batch, INPUT_DIM), jnp.float32)
    h0 = jax.random.normal(k_h, (NUM_LAYERS, batch, HIDDEN_DIM), jnp.float32)
    c0 = jax.random.normal(k_c, (NUM_LAYERS, batch, HIDDEN_DIM), jnp.float32)

    ref = _reference_forward(obs_traj_rel, (h0, c0), params)

    fwd = jax.jit(decoder_forward)

    # f32 matmul path: tight check (tolerance loosened only because the algebraic
    # weight fusion legitimately re-associates the fp math).
    prep_f32 = prepare_decoder_params(params, use_bf16_matmul=False)
    out_f32 = jax.block_until_ready(fwd(obs_traj_rel, (h0, c0), prep_f32))
    assert out_f32.shape == (PRED_LEN, batch, INPUT_DIM), out_f32.shape
    err = float(jnp.max(jnp.abs(out_f32 - ref)))
    assert err < 5e-4, err

    # bf16 matmul-input path (default; MXU-native on v5e/v6e/v7x). Accumulation /
    # gate math stay f32; error compounds over pred_len so the check is looser.
    prep_bf16 = prepare_decoder_params(params, use_bf16_matmul=True)
    out_bf16 = jax.block_until_ready(fwd(obs_traj_rel, (h0, c0), prep_bf16))
    assert out_bf16.shape == (PRED_LEN, batch, INPUT_DIM), out_bf16.shape
    err_bf16 = float(jnp.max(jnp.abs(out_bf16 - ref)))
    assert err_bf16 < 1e-1, err_bf16

    print("KERNEL_OK")
</pallas_src>

<mosaic_0001>
module attributes {stable_mosaic.version = 11 : i64} {
  func.func @_decoder_kernel(%arg0: memref<8x67xf32, #tpu.memory_space<vmem>>, %arg1: memref<8x64xf32, #tpu.memory_space<vmem>>, %arg2: memref<67x256xf32, #tpu.memory_space<vmem>>, %arg3: memref<1x256xf32, #tpu.memory_space<vmem>>, %arg4: memref<64x256xf32, #tpu.memory_space<vmem>>, %arg5: memref<1x256xf32, #tpu.memory_space<vmem>>, %arg6: memref<64x128xf32, #tpu.memory_space<vmem>>, %arg7: memref<1x128xf32, #tpu.memory_space<vmem>>, %arg8: memref<8x8x128xf32, #tpu.memory_space<vmem>>, %arg9: memref<64x64xf32, #tpu.memory_space<vmem>>) attributes {dimension_semantics = [], scalar_prefetch = 0 : i64, scratch_operands = 1 : i64, tpu.core_type = #tpu.core_type<tc>} {
    %c0 = arith.constant 0 : index
    %c0_0 = arith.constant 0 : index
    %0 = vector.load %arg2[%c0, %c0_0] : memref<67x256xf32, #tpu.memory_space<vmem>>, vector<67x256xf32>
    %c0_1 = arith.constant 0 : index
    %c0_2 = arith.constant 0 : index
    %1 = vector.load %arg4[%c0_1, %c0_2] : memref<64x256xf32, #tpu.memory_space<vmem>>, vector<64x256xf32>
    %c0_3 = arith.constant 0 : index
    %c0_4 = arith.constant 0 : index
    %2 = vector.load %arg3[%c0_3, %c0_4] : memref<1x256xf32, #tpu.memory_space<vmem>>, vector<1x256xf32>
    %3 = vector.shape_cast %2 : vector<1x256xf32> to vector<1x256xf32>
    %4 = vector.broadcast %3 : vector<1x256xf32> to vector<8x256xf32>
    %c0_5 = arith.constant 0 : index
    %c0_6 = arith.constant 0 : index
    %5 = vector.load %arg5[%c0_5, %c0_6] : memref<1x256xf32, #tpu.memory_space<vmem>>, vector<1x256xf32>
    %6 = vector.shape_cast %5 : vector<1x256xf32> to vector<1x256xf32>
    %7 = vector.broadcast %6 : vector<1x256xf32> to vector<8x256xf32>
    %c0_7 = arith.constant 0 : index
    %c0_8 = arith.constant 0 : index
    %8 = vector.load %arg1[%c0_7, %c0_8] : memref<8x64xf32, #tpu.memory_space<vmem>>, vector<8x64xf32>
    %c0_9 = arith.constant 0 : index
    %c0_10 = arith.constant 0 : index
    %9 = vector.load %arg0[%c0_9, %c0_10] : memref<8x67xf32, #tpu.memory_space<vmem>>, vector<8x67xf32>
    %cst = arith.constant dense<0.000000e+00> : vector<8x256xf32>
    %10 = tpu.matmul %9, %0, %cst {dimension_numbers = #tpu.dot_dimension_numbers<[1], [0], [0], [1], [0, 0, 1, 1], [], []>} : vector<8x67xf32>, vector<67x256xf32>, vector<8x256xf32> -> vector<8x256xf32>
    %11 = arith.addf %10, %4 : vector<8x256xf32>
    %12 = vector.extract_strided_slice %11 {offsets = [0, 0], sizes = [8, 128], strides = [1, 1]} : vector<8x256xf32> to vector<8x128xf32>
    %13 = arith.negf %12 : vector<8x128xf32>
    %14 = math.exp %13 : vector<8x128xf32>
    %cst_11 = arith.constant 1.000000e+00 : f32
    %15 = vector.broadcast %cst_11 : f32 to vector<8x128xf32>
    %16 = arith.addf %15, %14 : vector<8x128xf32>
    %17 = arith.divf %15, %16 : vector<8x128xf32>
    %18 = vector.extract_strided_slice %11 {offsets = [0, 128], sizes = [8, 128], strides = [1, 1]} : vector<8x256xf32> to vector<8x128xf32>
    %19 = arith.negf %18 : vector<8x128xf32>
    %20 = math.exp %19 : vector<8x128xf32>
    %cst_12 = arith.constant 1.000000e+00 : f32
    %21 = vector.broadcast %cst_12 : f32 to vector<8x128xf32>
    %22 = arith.addf %21, %20 : vector<8x128xf32>
    %23 = arith.divf %21, %22 : vector<8x128xf32>
    %24 = math.tanh %18 : vector<8x128xf32>
    %25 = vector.extract_strided_slice %17 {offsets = [0, 0], sizes = [8, 64], strides = [1, 1]} : vector<8x128xf32> to vector<8x64xf32>
    %26 = vector.extract_strided_slice %17 {offsets = [0, 64], sizes = [8, 64], strides = [1, 1]} : vector<8x128xf32> to vector<8x64xf32>
    %27 = vector.extract_strided_slice %23 {offsets = [0, 0], sizes = [8, 64], strides = [1, 1]} : vector<8x128xf32> to vector<8x64xf32>
    %28 = vector.extract_strided_slice %24 {offsets = [0, 64], sizes = [8, 64], strides = [1, 1]} : vector<8x128xf32> to vector<8x64xf32>
    %29 = arith.mulf %26, %8 : vector<8x64xf32>
    %30 = arith.mulf %25, %28 : vector<8x64xf32>
    %31 = arith.addf %29, %30 : vector<8x64xf32>
    %32 = math.tanh %31 : vector<8x64xf32>
    %33 = arith.mulf %27, %32 : vector<8x64xf32>
    %c0_13 = arith.constant 0 : index
    %c0_14 = arith.constant 0 : index
    %34 = vector.load %arg9[%c0_13, %c0_14] : memref<64x64xf32, #tpu.memory_space<vmem>>, vector<8x64xf32>
    tpu.vector_store %arg9[%c0_13, %c0_14], %33 {strides = array<i32>} : memref<64x64xf32, #tpu.memory_space<vmem>>, vector<8x64xf32>,
    %cst_15 = arith.constant dense<0.000000e+00> : vector<8x256xf32>
    %35 = tpu.matmul %33, %1, %cst_15 {dimension_numbers = #tpu.dot_dimension_numbers<[1], [0], [0], [1], [0, 0, 1, 1], [], []>} : vector<8x64xf32>, vector<64x256xf32>, vector<8x256xf32> -> vector<8x256xf32>
    %36 = arith.addf %35, %7 : vector<8x256xf32>
    %37 = vector.extract_strided_slice %36 {offsets = [0, 0], sizes = [8, 128], strides = [1, 1]} : vector<8x256xf32> to vector<8x128xf32>
    %38 = arith.negf %37 : vector<8x128xf32>
    %39 = math.exp %38 : vector<8x128xf32>
    %cst_16 = arith.constant 1.000000e+00 : f32
    %40 = vector.broadcast %cst_16 : f32 to vector<8x128xf32>
    %41 = arith.addf %40, %39 : vector<8x128xf32>
    %42 = arith.divf %40, %41 : vector<8x128xf32>
    %43 = vector.extract_strided_slice %36 {offsets = [0, 128], sizes = [8, 128], strides = [1, 1]} : vector<8x256xf32> to vector<8x128xf32>
    %44 = arith.negf %43 : vector<8x128xf32>
    %45 = math.exp %44 : vector<8x128xf32>
    %cst_17 = arith.constant 1.000000e+00 : f32
    %46 = vector.broadcast %cst_17 : f32 to vector<8x128xf32>
    %47 = arith.addf %46, %45 : vector<8x128xf32>
    %48 = arith.divf %46, %47 : vector<8x128xf32>
    %49 = math.tanh %43 : vector<8x128xf32>
    %50 = vector.extract_strided_slice %42 {offsets = [0, 0], sizes = [8, 64], strides = [1, 1]} : vector<8x128xf32> to vector<8x64xf32>
    %51 = vector.extract_strided_slice %42 {offsets = [0, 64], sizes = [8, 64], strides = [1, 1]} : vector<8x128xf32> to vector<8x64xf32>
    %52 = vector.extract_strided_slice %48 {offsets = [0, 0], sizes = [8, 64], strides = [1, 1]} : vector<8x128xf32> to vector<8x64xf32>
    %53 = vector.extract_strided_slice %49 {offsets = [0, 64], sizes = [8, 64], strides = [1, 1]} : vector<8x128xf32> to vector<8x64xf32>
    %54 = arith.mulf %51, %31 : vector<8x64xf32>
    %55 = arith.mulf %50, %53 : vector<8x64xf32>
    %56 = arith.addf %54, %55 : vector<8x64xf32>
    %57 = math.tanh %56 : vector<8x64xf32>
    %58 = arith.mulf %52, %57 : vector<8x64xf32>
    %c8 = arith.constant 8 : index
    %c0_18 = arith.constant 0 : index
    %59 = vector.load %arg9[%c8, %c0_18] : memref<64x64xf32, #tpu.memory_space<vmem>>, vector<8x64xf32>
    tpu.vector_store %arg9[%c8, %c0_18], %58 {strides = array<i32>} : memref<64x64xf32, #tpu.memory_space<vmem>>, vector<8x64xf32>,
    %cst_19 = arith.constant dense<0.000000e+00> : vector<8x256xf32>
    %60 = tpu.matmul %58, %1, %cst_19 {dimension_numbers = #tpu.dot_dimension_numbers<[1], [0], [0], [1], [0, 0, 1, 1], [], []>} : vector<8x64xf32>, vector<64x256xf32>, vector<8x256xf32> -> vector<8x256xf32>
    %61 = arith.addf %60, %7 : vector<8x256xf32>
    %62 = vector.extract_strided_slice %61 {offsets = [0, 0], sizes = [8, 128], strides = [1, 1]} : vector<8x256xf32> to vector<8x128xf32>
    %63 = arith.negf %62 : vector<8x128xf32>
    %64 = math.exp %63 : vector<8x128xf32>
    %cst_20 = arith.constant 1.000000e+00 : f32
    %65 = vector.broadcast %cst_20 : f32 to vector<8x128xf32>
    %66 = arith.addf %65, %64 : vector<8x128xf32>
    %67 = arith.divf %65, %66 : vector<8x128xf32>
    %68 = vector.extract_strided_slice %61 {offsets = [0, 128], sizes = [8, 128], strides = [1, 1]} : vector<8x256xf32> to vector<8x128xf32>
    %69 = arith.negf %68 : vector<8x128xf32>
    %70 = math.exp %69 : vector<8x128xf32>
    %cst_21 = arith.constant 1.000000e+00 : f32
    %71 = vector.broadcast %cst_21 : f32 to vector<8x128xf32>
    %72 = arith.addf %71, %70 : vector<8x128xf32>
    %73 = arith.divf %71, %72 : vector<8x128xf32>
    %74 = math.tanh %68 : vector<8x128xf32>
    %75 = vector.extract_strided_slice %67 {offsets = [0, 0], sizes = [8, 64], strides = [1, 1]} : vector<8x128xf32> to vector<8x64xf32>
    %76 = vector.extract_strided_slice %67 {offsets = [0, 64], sizes = [8, 64], strides = [1, 1]} : vector<8x128xf32> to vector<8x64xf32>
    %77 = vector.extract_strided_slice %73 {offsets = [0, 0], sizes = [8, 64], strides = [1, 1]} : vector<8x128xf32> to vector<8x64xf32>
    %78 = vector.extract_strided_slice %74 {offsets = [0, 64], sizes = [8, 64], strides = [1, 1]} : vector<8x128xf32> to vector<8x64xf32>
    %79 = arith.mulf %76, %56 : vector<8x64xf32>
    %80 = arith.mulf %75, %78 : vector<8x64xf32>
    %81 = arith.addf %79, %80 : vector<8x64xf32>
    %82 = math.tanh %81 : vector<8x64xf32>
    %83 = arith.mulf %77, %82 : vector<8x64xf32>
    %c16 = arith.constant 16 : index
    %c0_22 = arith.constant 0 : index
    %84 = vector.load %arg9[%c16, %c0_22] : memref<64x64xf32, #tpu.memory_space<vmem>>, vector<8x64xf32>
    tpu.vector_store %arg9[%c16, %c0_22], %83 {strides = array<i32>} : memref<64x64xf32, #tpu.memory_space<vmem>>, vector<8x64xf32>,
    %cst_23 = arith.constant dense<0.000000e+00> : vector<8x256xf32>
    %85 = tpu.matmul %83, %1, %cst_23 {dimension_numbers = #tpu.dot_dimension_numbers<[1], [0], [0], [1], [0, 0, 1, 1], [], []>} : vector<8x64xf32>, vector<64x256xf32>, vector<8x256xf32> -> vector<8x256xf32>
    %86 = arith.addf %85, %7 : vector<8x256xf32>
    %87 = vector.extract_strided_slice %86 {offsets = [0, 0], sizes = [8, 128], strides = [1, 1]} : vector<8x256xf32> to vector<8x128xf32>
    %88 = arith.negf %87 : vector<8x128xf32>
    %89 = math.exp %88 : vector<8x128xf32>
    %cst_24 = arith.constant 1.000000e+00 : f32
    %90 = vector.broadcast %cst_24 : f32 to vector<8x128xf32>
    %91 = arith.addf %90, %89 : vector<8x128xf32>
    %92 = arith.divf %90, %91 : vector<8x128xf32>
    %93 = vector.extract_strided_slice %86 {offsets = [0, 128], sizes = [8, 128], strides = [1, 1]} : vector<8x256xf32> to vector<8x128xf32>
    %94 = arith.negf %93 : vector<8x128xf32>
    %95 = math.exp %94 : vector<8x128xf32>
    %cst_25 = arith.constant 1.000000e+00 : f32
    %96 = vector.broadcast %cst_25 : f32 to vector<8x128xf32>
    %97 = arith.addf %96, %95 : vector<8x128xf32>
    %98 = arith.divf %96, %97 : vector<8x128xf32>
    %99 = math.tanh %93 : vector<8x128xf32>
    %100 = vector.extract_strided_slice %92 {offsets = [0, 0], sizes = [8, 64], strides = [1, 1]} : vector<8x128xf32> to vector<8x64xf32>
    %101 = vector.extract_strided_slice %92 {offsets = [0, 64], sizes = [8, 64], strides = [1, 1]} : vector<8x128xf32> to vector<8x64xf32>
    %102 = vector.extract_strided_slice %98 {offsets = [0, 0], sizes = [8, 64], strides = [1, 1]} : vector<8x128xf32> to vector<8x64xf32>
    %103 = vector.extract_strided_slice %99 {offsets = [0, 64], sizes = [8, 64], strides = [1, 1]} : vector<8x128xf32> to vector<8x64xf32>
    %104 = arith.mulf %101, %81 : vector<8x64xf32>
    %105 = arith.mulf %100, %103 : vector<8x64xf32>
    %106 = arith.addf %104, %105 : vector<8x64xf32>
    %107 = math.tanh %106 : vector<8x64xf32>
    %108 = arith.mulf %102, %107 : vector<8x64xf32>
    %c24 = arith.constant 24 : index
    %c0_26 = arith.constant 0 : index
    %109 = vector.load %arg9[%c24, %c0_26] : memref<64x64xf32, #tpu.memory_space<vmem>>, vector<8x64xf32>
    tpu.vector_store %arg9[%c24, %c0_26], %108 {strides = array<i32>} : memref<64x64xf32, #tpu.memory_space<vmem>>, vector<8x64xf32>,
    %cst_27 = arith.constant dense<0.000000e+00> : vector<8x256xf32>
    %110 = tpu.matmul %108, %1, %cst_27 {dimension_numbers = #tpu.dot_dimension_numbers<[1], [0], [0], [1], [0, 0, 1, 1], [], []>} : vector<8x64xf32>, vector<64x256xf32>, vector<8x256xf32> -> vector<8x256xf32>
    %111 = arith.addf %110, %7 : vector<8x256xf32>
    %112 = vector.extract_strided_slice %111 {offsets = [0, 0], sizes = [8, 128], strides = [1, 1]} : vector<8x256xf32> to vector<8x128xf32>
    %113 = arith.negf %112 : vector<8x128xf32>
    %114 = math.exp %113 : vector<8x128xf32>
    %cst_28 = arith.constant 1.000000e+00 : f32
    %115 = vector.broadcast %cst_28 : f32 to vector<8x128xf32>
    %116 = arith.addf %115, %114 : vector<8x128xf32>
    %117 = arith.divf %115, %116 : vector<8x128xf32>
    %118 = vector.extract_strided_slice %111 {offsets = [0, 128], sizes = [8, 128], strides = [1, 1]} : vector<8x256xf32> to vector<8x128xf32>
    %119 = arith.negf %118 : vector<8x128xf32>
    %120 = math.exp %119 : vector<8x128xf32>
    %cst_29 = arith.constant 1.000000e+00 : f32
    %121 = vector.broadcast %cst_29 : f32 to vector<8x128xf32>
    %122 = arith.addf %121, %120 : vector<8x128xf32>
    %123 = arith.divf %121, %122 : vector<8x128xf32>
    %124 = math.tanh %118 : vector<8x128xf32>
    %125 = vector.extract_strided_slice %117 {offsets = [0, 0], sizes = [8, 64], strides = [1, 1]} : vector<8x128xf32> to vector<8x64xf32>
    %126 = vector.extract_strided_slice %117 {offsets = [0, 64], sizes = [8, 64], strides = [1, 1]} : vector<8x128xf32> to vector<8x64xf32>
    %127 = vector.extract_strided_slice %123 {offsets = [0, 0], sizes = [8, 64], strides = [1, 1]} : vector<8x128xf32> to vector<8x64xf32>
    %128 = vector.extract_strided_slice %124 {offsets = [0, 64], sizes = [8, 64], strides = [1, 1]} : vector<8x128xf32> to vector<8x64xf32>
    %129 = arith.mulf %126, %106 : vector<8x64xf32>
    %130 = arith.mulf %125, %128 : vector<8x64xf32>
    %131 = arith.addf %129, %130 : vector<8x64xf32>
    %132 = math.tanh %131 : vector<8x64xf32>
    %133 = arith.mulf %127, %132 : vector<8x64xf32>
    %c32 = arith.constant 32 : index
    %c0_30 = arith.constant 0 : index
    %134 = vector.load %arg9[%c32, %c0_30] : memref<64x64xf32, #tpu.memory_space<vmem>>, vector<8x64xf32>
    tpu.vector_store %arg9[%c32, %c0_30], %133 {strides = array<i32>} : memref<64x64xf32, #tpu.memory_space<vmem>>, vector<8x64xf32>,
    %cst_31 = arith.constant dense<0.000000e+00> : vector<8x256xf32>
    %135 = tpu.matmul %133, %1, %cst_31 {dimension_numbers = #tpu.dot_dimension_numbers<[1], [0], [0], [1], [0, 0, 1, 1], [], []>} : vector<8x64xf32>, vector<64x256xf32>, vector<8x256xf32> -> vector<8x256xf32>
    %136 = arith.addf %135, %7 : vector<8x256xf32>
    %137 = vector.extract_strided_slice %136 {offsets = [0, 0], sizes = [8, 128], strides = [1, 1]} : vector<8x256xf32> to vector<8x128xf32>
    %138 = arith.negf %137 : vector<8x128xf32>
    %139 = math.exp %138 : vector<8x128xf32>
    %cst_32 = arith.constant 1.000000e+00 : f32
    %140 = vector.broadcast %cst_32 : f32 to vector<8x128xf32>
    %141 = arith.addf %140, %139 : vector<8x128xf32>
    %142 = arith.divf %140, %141 : vector<8x128xf32>
    %143 = vector.extract_strided_slice %136 {offsets = [0, 128], sizes = [8, 128], strides = [1, 1]} : vector<8x256xf32> to vector<8x128xf32>
    %144 = arith.negf %143 : vector<8x128xf32>
    %145 = math.exp %144 : vector<8x128xf32>
    %cst_33 = arith.constant 1.000000e+00 : f32
    %146 = vector.broadcast %cst_33 : f32 to vector<8x128xf32>
    %147 = arith.addf %146, %145 : vector<8x128xf32>
    %148 = arith.divf %146, %147 : vector<8x128xf32>
    %149 = math.tanh %143 : vector<8x128xf32>
    %150 = vector.extract_strided_slice %142 {offsets = [0, 0], sizes = [8, 64], strides = [1, 1]} : vector<8x128xf32> to vector<8x64xf32>
    %151 = vector.extract_strided_slice %142 {offsets = [0, 64], sizes = [8, 64], strides = [1, 1]} : vector<8x128xf32> to vector<8x64xf32>
    %152 = vector.extract_strided_slice %148 {offsets = [0, 0], sizes = [8, 64], strides = [1, 1]} : vector<8x128xf32> to vector<8x64xf32>
    %153 = vector.extract_strided_slice %149 {offsets = [0, 64], sizes = [8, 64], strides = [1, 1]} : vector<8x128xf32> to vector<8x64xf32>
    %154 = arith.mulf %151, %131 : vector<8x64xf32>
    %155 = arith.mulf %150, %153 : vector<8x64xf32>
    %156 = arith.addf %154, %155 : vector<8x64xf32>
    %157 = math.tanh %156 : vector<8x64xf32>
    %158 = arith.mulf %152, %157 : vector<8x64xf32>
    %c40 = arith.constant 40 : index
    %c0_34 = arith.constant 0 : index
    %159 = vector.load %arg9[%c40, %c0_34] : memref<64x64xf32, #tpu.memory_space<vmem>>, vector<8x64xf32>
    tpu.vector_store %arg9[%c40, %c0_34], %158 {strides = array<i32>} : memref<64x64xf32, #tpu.memory_space<vmem>>, vector<8x64xf32>,
    %cst_35 = arith.constant dense<0.000000e+00> : vector<8x256xf32>
    %160 = tpu.matmul %158, %1, %cst_35 {dimension_numbers = #tpu.dot_dimension_numbers<[1], [0], [0], [1], [0, 0, 1, 1], [], []>} : vector<8x64xf32>, vector<64x256xf32>, vector<8x256xf32> -> vector<8x256xf32>
    %161 = arith.addf %160, %7 : vector<8x256xf32>
    %162 = vector.extract_strided_slice %161 {offsets = [0, 0], sizes = [8, 128], strides = [1, 1]} : vector<8x256xf32> to vector<8x128xf32>
    %163 = arith.negf %162 : vector<8x128xf32>
    %164 = math.exp %163 : vector<8x128xf32>
    %cst_36 = arith.constant 1.000000e+00 : f32
    %165 = vector.broadcast %cst_36 : f32 to vector<8x128xf32>
    %166 = arith.addf %165, %164 : vector<8x128xf32>
    %167 = arith.divf %165, %166 : vector<8x128xf32>
    %168 = vector.extract_strided_slice %161 {offsets = [0, 128], sizes = [8, 128], strides = [1, 1]} : vector<8x256xf32> to vector<8x128xf32>
    %169 = arith.negf %168 : vector<8x128xf32>
    %170 = math.exp %169 : vector<8x128xf32>
    %cst_37 = arith.constant 1.000000e+00 : f32
    %171 = vector.broadcast %cst_37 : f32 to vector<8x128xf32>
    %172 = arith.addf %171, %170 : vector<8x128xf32>
    %173 = arith.divf %171, %172 : vector<8x128xf32>
    %174 = math.tanh %168 : vector<8x128xf32>
    %175 = vector.extract_strided_slice %167 {offsets = [0, 0], sizes = [8, 64], strides = [1, 1]} : vector<8x128xf32> to vector<8x64xf32>
    %176 = vector.extract_strided_slice %167 {offsets = [0, 64], sizes = [8, 64], strides = [1, 1]} : vector<8x128xf32> to vector<8x64xf32>
    %177 = vector.extract_strided_slice %173 {offsets = [0, 0], sizes = [8, 64], strides = [1, 1]} : vector<8x128xf32> to vector<8x64xf32>
    %178 = vector.extract_strided_slice %174 {offsets = [0, 64], sizes = [8, 64], strides = [1, 1]} : vector<8x128xf32> to vector<8x64xf32>
    %179 = arith.mulf %176, %156 : vector<8x64xf32>
    %180 = arith.mulf %175, %178 : vector<8x64xf32>
    %181 = arith.addf %179, %180 : vector<8x64xf32>
    %182 = math.tanh %181 : vector<8x64xf32>
    %183 = arith.mulf %177, %182 : vector<8x64xf32>
    %c48 = arith.constant 48 : index
    %c0_38 = arith.constant 0 : index
    %184 = vector.load %arg9[%c48, %c0_38] : memref<64x64xf32, #tpu.memory_space<vmem>>, vector<8x64xf32>
    tpu.vector_store %arg9[%c48, %c0_38], %183 {strides = array<i32>} : memref<64x64xf32, #tpu.memory_space<vmem>>, vector<8x64xf32>,
    %cst_39 = arith.constant dense<0.000000e+00> : vector<8x256xf32>
    %185 = tpu.matmul %183, %1, %cst_39 {dimension_numbers = #tpu.dot_dimension_numbers<[1], [0], [0], [1], [0, 0, 1, 1], [], []>} : vector<8x64xf32>, vector<64x256xf32>, vector<8x256xf32> -> vector<8x256xf32>
    %186 = arith.addf %185, %7 : vector<8x256xf32>
    %187 = vector.extract_strided_slice %186 {offsets = [0, 0], sizes = [8, 128], strides = [1, 1]} : vector<8x256xf32> to vector<8x128xf32>
    %188 = arith.negf %187 : vector<8x128xf32>
    %189 = math.exp %188 : vector<8x128xf32>
    %cst_40 = arith.constant 1.000000e+00 : f32
    %190 = vector.broadcast %cst_40 : f32 to vector<8x128xf32>
    %191 = arith.addf %190, %189 : vector<8x128xf32>
    %192 = arith.divf %190, %191 : vector<8x128xf32>
    %193 = vector.extract_strided_slice %186 {offsets = [0, 128], sizes = [8, 128], strides = [1, 1]} : vector<8x256xf32> to vector<8x128xf32>
    %194 = arith.negf %193 : vector<8x128xf32>
    %195 = math.exp %194 : vector<8x128xf32>
    %cst_41 = arith.constant 1.000000e+00 : f32
    %196 = vector.broadcast %cst_41 : f32 to vector<8x128xf32>
    %197 = arith.addf %196, %195 : vector<8x128xf32>
    %198 = arith.divf %196, %197 : vector<8x128xf32>
    %199 = math.tanh %193 : vector<8x128xf32>
    %200 = vector.extract_strided_slice %192 {offsets = [0, 0], sizes = [8, 64], strides = [1, 1]} : vector<8x128xf32> to vector<8x64xf32>
    %201 = vector.extract_strided_slice %192 {offsets = [0, 64], sizes = [8, 64], strides = [1, 1]} : vector<8x128xf32> to vector<8x64xf32>
    %202 = vector.extract_strided_slice %198 {offsets = [0, 0], sizes = [8, 64], strides = [1, 1]} : vector<8x128xf32> to vector<8x64xf32>
    %203 = vector.extract_strided_slice %199 {offsets = [0, 64], sizes = [8, 64], strides = [1, 1]} : vector<8x128xf32> to vector<8x64xf32>
    %204 = arith.mulf %201, %181 : vector<8x64xf32>
    %205 = arith.mulf %200, %203 : vector<8x64xf32>
    %206 = arith.addf %204, %205 : vector<8x64xf32>
    %207 = math.tanh %206 : vector<8x64xf32>
    %208 = arith.mulf %202, %207 : vector<8x64xf32>
    %c56 = arith.constant 56 : index
    %c0_42 = arith.constant 0 : index
    %209 = vector.load %arg9[%c56, %c0_42] : memref<64x64xf32, #tpu.memory_space<vmem>>, vector<8x64xf32>
    tpu.vector_store %arg9[%c56, %c0_42], %208 {strides = array<i32>} : memref<64x64xf32, #tpu.memory_space<vmem>>, vector<8x64xf32>,
    %c0_43 = arith.constant 0 : index
    %c0_44 = arith.constant 0 : index
    %210 = vector.load %arg9[%c0_43, %c0_44] : memref<64x64xf32, #tpu.memory_space<vmem>>, vector<64x64xf32>
    %c0_45 = arith.constant 0 : index
    %c0_46 = arith.constant 0 : index
    %211 = vector.load %arg6[%c0_45, %c0_46] : memref<64x128xf32, #tpu.memory_space<vmem>>, vector<64x128xf32>
    %cst_47 = arith.constant dense<0.000000e+00> : vector<64x128xf32>
    %212 = tpu.matmul %210, %211, %cst_47 {dimension_numbers = #tpu.dot_dimension_numbers<[1], [0], [0], [1], [0, 0, 1, 1], [], []>} : vector<64x64xf32>, vector<64x128xf32>, vector<64x128xf32> -> vector<64x128xf32>
    %c0_48 = arith.constant 0 : index
    %c0_49 = arith.constant 0 : index
    %213 = vector.load %arg7[%c0_48, %c0_49] : memref<1x128xf32, #tpu.memory_space<vmem>>, vector<1x128xf32>
    %214 = vector.broadcast %213 : vector<1x128xf32> to vector<64x128xf32>
    %215 = arith.addf %212, %214 : vector<64x128xf32>
    %216 = vector.shape_cast %215 : vector<64x128xf32> to vector<8x8x128xf32>
    %c0_50 = arith.constant 0 : index
    %c0_51 = arith.constant 0 : index
    %c0_52 = arith.constant 0 : index
    %217 = vector.load %arg8[%c0_50, %c0_51, %c0_52] : memref<8x8x128xf32, #tpu.memory_space<vmem>>, vector<8x8x128xf32>
    tpu.vector_store %arg8[%c0_50, %c0_51, %c0_52], %216 {strides = array<i32>} : memref<8x8x128xf32, #tpu.memory_space<vmem>>, vector<8x8x128xf32>,
    return
  }
}

</mosaic_0001>

<llo_original>
// kernel: decoder_forward.1
$region0: #{decoder_forward.1}
  #allocation0 [shape = 'u32[]', space=smem, size = 0x4, offset = 0x4, fixed_abs, tag = 'smem constant byte address 0x4 - core index']
  #allocation1 [shape = 'u32[144,128]{1,0:T(1,128)}', space=vmem, size = 0x12000, scoped, tag = 'internal scratch']
  #allocation2 [shape = 'f32[64,64]{1,0:T(8,128)}', space=vmem, size = 0x8000, scoped, tag = 'scratch operand']
  %s0 = inlined_call_operand.vmem [shape: f32[8,67], index: 0, kind: input, shape index: {}]
  %s1 = inlined_call_operand.vmem [shape: f32[8,64], index: 1, kind: input, shape index: {}]
  %s2 = inlined_call_operand.hbm [shape: f32[67,256], index: 2, kind: input, shape index: {}]
  %s3 = inlined_call_operand.vmem [shape: f32[1,256], index: 3, kind: input, shape index: {}]
  %s4 = inlined_call_operand.hbm [shape: f32[64,256], index: 4, kind: input, shape index: {}]
  %s5 = inlined_call_operand.vmem [shape: f32[1,256], index: 5, kind: input, shape index: {}]
  %s6 = inlined_call_operand.vmem [shape: f32[64,128], index: 6, kind: input, shape index: {}]
  %s7 = inlined_call_operand.vmem [shape: f32[1,128], index: 7, kind: input, shape index: {}]
  %s8 = inlined_call_operand.vmem [shape: f32[8,8,128], index: 8, kind: output, shape index: {}]
  %s9 = sld [smem:[#allocation0]]
  $region50: #{decoder_forward.1} parent=0
    _
  %s11 = ssub.s32 1, %s9
  %s12 = scalar_select 0, %s11, %s9
  $region1: #{decoder_forward.1} parent=0
    #allocation3 [shape = 'u8[73728]{0}', space=vmem, size = 0x12000, scoped, tag = 'input window, operand 2, single buffered']
    #allocation4 [shape = 's32[1]{0}', space=sflag, size = 0x4, scoped, tag = 'scoped memory for decoder_forward.1']
    #allocation5 [shape = 'u8[65536]{0}', space=vmem, size = 0x10000, scoped, tag = 'input window, operand 4, single buffered']
    #allocation6 [shape = 's32[1]{0}', space=sflag, size = 0x4, scoped, tag = 'scoped memory for decoder_forward.1']
    %13 = vsyncpa [#allocation4], 0
    %14 = vsyncpa [#allocation6], 0
    // Predicated region
    $region2: #{decoder_forward.1} parent=1 // pred_check
      _
    $region3: #{decoder_forward.1} parent=1 // pred_check_branch
      %16 = sbr.rel (0) target = $region5
    $region4: #{decoder_forward.1} parent=1 // pred_region
      _
    $region5: #{decoder_forward.1} parent=1 // pred_fallthru
      _
    // Predicated region
    $region6: #{decoder_forward.1} parent=1 // pred_check
      _
    $region7: #{decoder_forward.1} parent=1 // pred_check_branch
      %18 = sbr.rel (0) target = $region9
    $region8: #{decoder_forward.1} parent=1 // pred_region
      _
    $region9: #{decoder_forward.1} parent=1 // pred_fallthru
      _
    // Predicated region
    $region10: #{decoder_forward.1} parent=1 // pred_check
      _
    $region11: #{decoder_forward.1} parent=1 // pred_check_branch
      %20 = sbr.rel (0) target = $region13
    $region12: #{decoder_forward.1} parent=1 // pred_region
      %s22 = ssub.s32 2304, 2304
      %23 = vsyncadd [#allocation4], %s22
      %s24 = sshll.u32 [#allocation3], 4
      %s25 = int_to_ptr.vmem [resolvable:$true] %s24
      %30 = dma.hbm_to_vmem [thread:$0]  %s2, 2304, %s25, [#allocation4], 256, 256, 16
    $region13: #{decoder_forward.1} parent=1 // pred_fallthru
      _
    // Predicated region
    $region14: #{decoder_forward.1} parent=1 // pred_check
      _
    $region15: #{decoder_forward.1} parent=1 // pred_check_branch
      %32 = sbr.rel (0) target = $region17
    $region16: #{decoder_forward.1} parent=1 // pred_region
      _
    $region17: #{decoder_forward.1} parent=1 // pred_fallthru
      _
    // Predicated region
    $region18: #{decoder_forward.1} parent=1 // pred_check
      _
    $region19: #{decoder_forward.1} parent=1 // pred_check_branch
      %34 = sbr.rel (0) target = $region21
    $region20: #{decoder_forward.1} parent=1 // pred_region
      %s36 = ssub.s32 2048, 2048
      %37 = vsyncadd [#allocation6], %s36
      %s38 = sshll.u32 [#allocation5], 4
      %s39 = int_to_ptr.vmem [resolvable:$true] %s38
      %44 = dma.hbm_to_vmem [thread:$0]  %s4, 2048, %s39, [#allocation6], 256, 256, 16
    $region21: #{decoder_forward.1} parent=1 // pred_fallthru
      _
    // Predicated region
    $region22: #{decoder_forward.1} parent=1 // pred_check
      _
    $region23: #{decoder_forward.1} parent=1 // pred_check_branch
      %46 = sbr.rel (0) target = $region25
    $region24: #{decoder_forward.1} parent=1 // pred_region
      _
    $region25: #{decoder_forward.1} parent=1 // pred_fallthru
      _
    // Predicated region
    $region26: #{decoder_forward.1} parent=1 // pred_check
      _
    $region27: #{decoder_forward.1} parent=1 // pred_check_branch
      %48 = sbr.rel (0) target = $region29
    $region28: #{decoder_forward.1} parent=1 // pred_region
      _
    $region29: #{decoder_forward.1} parent=1 // pred_fallthru
      _
    // Predicated region
    $region30: #{decoder_forward.1} parent=1 // pred_check
      _
    $region31: #{decoder_forward.1} parent=1 // pred_check_branch
      %50 = sbr.rel (0) target = $region33
    $region32: #{decoder_forward.1} parent=1 // pred_region
      _
    $region33: #{decoder_forward.1} parent=1 // pred_fallthru
      _
    // Predicated region
    $region34: #{decoder_forward.1} parent=1 // pred_check
      _
    $region35: #{decoder_forward.1} parent=1 // pred_check_branch
      %52 = sbr.rel (0) target = $region37
    $region36: #{decoder_forward.1} parent=1 // pred_region
      %53 = dma.done [#allocation4], 2304
    $region37: #{decoder_forward.1} parent=1 // pred_fallthru
      _
    // Predicated region
    $region38: #{decoder_forward.1} parent=1 // pred_check
      _
    $region39: #{decoder_forward.1} parent=1 // pred_check_branch
      %55 = sbr.rel (0) target = $region41
    $region40: #{decoder_forward.1} parent=1 // pred_region
      %56 = dma.done [#allocation6], 2048
    $region41: #{decoder_forward.1} parent=1 // pred_fallthru
      _
    %v57 = vld [vmem:[#allocation3] sm:$0xff]
    %v58 = vld [vmem:[#allocation3 + $0x8] sm:$0xff]
    %v59 = vld [vmem:[#allocation3 + $0x10] sm:$0xff]
    %v60 = vld [vmem:[#allocation3 + $0x18] sm:$0xff]
    %v61 = vld [vmem:[#allocation3 + $0x20] sm:$0xff]
    %v62 = vld [vmem:[#allocation3 + $0x28] sm:$0xff]
    %v63 = vld [vmem:[#allocation3 + $0x30] sm:$0xff]
    %v64 = vld [vmem:[#allocation3 + $0x38] sm:$0xff]
    %v65 = vld [vmem:[#allocation3 + $0x40] sm:$0xff]
    %v66 = vld [vmem:[#allocation3 + $0x48] sm:$0xff]
    %v67 = vld [vmem:[#allocation3 + $0x50] sm:$0xff]
    %v68 = vld [vmem:[#allocation3 + $0x58] sm:$0xff]
    %v69 = vld [vmem:[#allocation3 + $0x60] sm:$0xff]
    %v70 = vld [vmem:[#allocation3 + $0x68] sm:$0xff]
    %v71 = vld [vmem:[#allocation3 + $0x70] sm:$0xff]
    %v72 = vld [vmem:[#allocation3 + $0x78] sm:$0xff]
    %v73 = vld [vmem:[#allocation3 + $0x80] sm:$0x7]
    %v74 = vld [vmem:[#allocation3 + $0x88] sm:$0x7]
    %v75 = vld [vmem:[#allocation5] sm:$0xff]
    %v76 = vld [vmem:[#allocation5 + $0x8] sm:$0xff]
    %v77 = vld [vmem:[#allocation5 + $0x10] sm:$0xff]
    %v78 = vld [vmem:[#allocation5 + $0x18] sm:$0xff]
    %v79 = vld [vmem:[#allocation5 + $0x20] sm:$0xff]
    %v80 = vld [vmem:[#allocation5 + $0x28] sm:$0xff]
    %v81 = vld [vmem:[#allocation5 + $0x30] sm:$0xff]
    %v82 = vld [vmem:[#allocation5 + $0x38] sm:$0xff]
    %v83 = vld [vmem:[#allocation5 + $0x40] sm:$0xff]
    %v84 = vld [vmem:[#allocation5 + $0x48] sm:$0xff]
    %v85 = vld [vmem:[#allocation5 + $0x50] sm:$0xff]
    %v86 = vld [vmem:[#allocation5 + $0x58] sm:$0xff]
    %v87 = vld [vmem:[#allocation5 + $0x60] sm:$0xff]
    %v88 = vld [vmem:[#allocation5 + $0x68] sm:$0xff]
    %v89 = vld [vmem:[#allocation5 + $0x70] sm:$0xff]
    %v90 = vld [vmem:[#allocation5 + $0x78] sm:$0xff]
    %v91 = vld [vmem:[%s3] sm:$0x3]
    %v93 = vlaneseq
    %v94 = vshrl.u32 %v93, 7
    %v95 = vsub.s32 0, %v94
    %v96 = vrot.slane %v91, %v95
    %v97 = vlaneseq
    %v98 = vshrl.u32 %v97, 7
    %v99 = vsub.s32 1, %v98
    %v100 = vrot.slane %v91, %v99
    %v103 = vld [vmem:[%s5] sm:$0x3]
    %v105 = vlaneseq
    %v106 = vshrl.u32 %v105, 7
    %v107 = vsub.s32 0, %v106
    %v108 = vrot.slane %v103, %v107
    %v109 = vlaneseq
    %v110 = vshrl.u32 %v109, 7
    %v111 = vsub.s32 1, %v110
    %v112 = vrot.slane %v103, %v111
    %v115 = vld [vmem:[%s1] sm:$0xff]
    %v116 = vld [vmem:[%s0] sm:$0xff]
    %vm117 = vcmask 547840
    %v119 = vsel %vm117, %v116, 0
    %vm121 = vcmask 1042432
    %v123 = vsel %vm121, %v73, 0
    %v126 = vsel %vm121, %v74, 0
    %128 = vmatprep.subr.mxu0 %v58
    %129 = vmatpush1.msra.mxu0 %v57
    %130 = vmatprep.subr.mxu0 %v60
    %131 = vmatpush1.msra.mxu0 %v59
    %132 = vmatprep.subr.mxu0 %v62
    %133 = vmatpush1.msra.mxu0 %v61
    %134 = vmatprep.subr.mxu0 %v64
    %135 = vmatpush1.msra.mxu0 %v63
    %136 = vmatprep.subr.mxu0 %v66
    %137 = vmatpush1.msra.mxu0 %v65
    %138 = vmatprep.subr.mxu0 %v68
    %139 = vmatpush1.msra.mxu0 %v67
    %140 = vmatprep.subr.mxu0 %v70
    %141 = vmatpush1.msra.mxu0 %v69
    %142 = vmatprep.subr.mxu0 %v72
    %143 = vmatpush1.msra.mxu0 %v71
    %144 = vmatprep.subr.mxu0 %v126
    %145 = vmatpush1.msra.mxu0 %v123
    %146 = vmatprep.subr.mxu0 0.0
    %147 = vmatpush1.msra.mxu0 0.0
    %148 = vmatprep.subr.mxu0 0.0
    %149 = vmatpush1.msra.mxu0 0.0
    %150 = vmatprep.subr.mxu0 0.0
    %151 = vmatpush1.msra.mxu0 0.0
    %152 = vmatprep.subr.mxu0 0.0
    %153 = vmatpush1.msra.mxu0 0.0
    %154 = vmatprep.subr.mxu0 0.0
    %155 = vmatpush1.msra.mxu0 0.0
    %156 = vmatprep.subr.mxu0 0.0
    %157 = vmatpush1.msra.mxu0 0.0
    %158 = vmatprep.subr.mxu0 0.0
    %159 = vmatpush1.msra.mxu0 0.0
    %160 = vmatprep.subr.mxu0 0.0
    %161 = vmatpush1.msra.mxu0 0.0
    %162 = vmatprep.subr.mxu0 0.0
    %163 = vmatpush1.msra.mxu0 0.0
    %164 = vmatprep.subr.mxu0 0.0
    %165 = vmatpush1.msra.mxu0 0.0
    %166 = vmatprep.subr.mxu0 0.0
    %167 = vmatpush1.msra.mxu0 0.0
    %168 = vmatprep.subr.mxu0 0.0
    %169 = vmatpush1.msra.mxu0 0.0
    %170 = vmatprep.subr.mxu0 0.0
    %171 = vmatpush1.msra.mxu0 0.0
    %172 = vmatprep.subr.mxu0 0.0
    %173 = vmatpush1.msra.mxu0 0.0
    %174 = vmatprep.subr.mxu0 0.0
    %175 = vmatpush1.msra.mxu0 0.0
    %176 = vmatprep.subr.mxu0 0.0
    %177 = vmatpush1.msra.mxu0 0.0
    %178 = vmatprep.subr.mxu0 0.0
    %179 = vmatpush1.msra.mxu0 0.0
    %180 = vmatprep.subr.mxu0 0.0
    %181 = vmatpush1.msra.mxu0 0.0
    %182 = vmatprep.subr.mxu0 0.0
    %183 = vmatpush1.msra.mxu0 0.0
    %184 = vmatprep.subr.mxu0 0.0
    %185 = vmatpush1.msra.mxu0 0.0
    %186 = vmatprep.subr.mxu0 0.0
    %187 = vmatpush1.msra.mxu0 0.0
    %188 = vmatprep.subr.mxu0 0.0
    %189 = vmatpush1.msra.mxu0 0.0
    %190 = vmatprep.subr.mxu0 0.0
    %191 = vmatpush1.msra.mxu0 0.0
    %192 = vmatprep.mubr.f32.mxu0 0.0
    %193 = vmatmul.mubr.f32.gmra.mrb[0].mxu0 %v119
    %v194 = vpop.f32.mrb[0].mxu0
    %v195 = vadd.f32 %v96, %v194
    %v196 = vpop.f32.mrb[0].mxu0
    %v197 = vadd.f32 %v100, %v196
    %198 = vdwg.mxu0
    %v199 = vxor.u32 %v195, 2147483648
    %v200 = vmul.f32 %v199, 1.442695
    %v201 = vpow.pop %v200
    %v202 = vadd.f32 %v201, 1.0
    %v203 = vrcp.pop %v202
    %v204 = vmul.f32 1.0, %v203
    %v205 = vxor.u32 %v197, 2147483648
    %v206 = vmul.f32 %v205, 1.442695
    %v207 = vpow.pop %v206
    %v208 = vadd.f32 %v207, 1.0
    %v209 = vrcp.pop %v208
    %v210 = vmul.f32 1.0, %v209
    %v211 = vtanh.pop %v197
    %213 = vrot.lane.b32.xlu0 %v115, 64
    %v214 = vpop.permute.xlu0 %213
    %v216 = vmul.f32 %v204, %v214
    %218 = vrot.lane.b32.xlu0 %v211, 64
    %v219 = vpop.permute.xlu0 %218
    %v221 = vmul.f32 %v204, %v219
    %223 = vrot.lane.b32.xlu0 %v221, 64
    %v224 = vpop.permute.xlu0 %223
    %v226 = vadd.f32 %v216, %v224
    %v227 = vtanh.pop %v226
    %229 = vrot.lane.b32.xlu0 %v227, 64
    %v230 = vpop.permute.xlu0 %229
    %v232 = vmul.f32 %v210, %v230
    %vm233 = vcmask 523264
    %234 = vst.msk [vmem:[#allocation2] sm:$0xff] %vm233, %v232
    %v236 = vsel %vm233, %v232, 0
    %238 = vmatprep.subr.mxu0 %v76
    %239 = vmatpush1.msra.mxu0 %v75
    %240 = vmatprep.subr.mxu0 %v78
    %241 = vmatpush1.msra.mxu0 %v77
    %242 = vmatprep.subr.mxu0 %v80
    %243 = vmatpush1.msra.mxu0 %v79
    %244 = vmatprep.subr.mxu0 %v82
    %245 = vmatpush1.msra.mxu0 %v81
    %246 = vmatprep.subr.mxu0 %v84
    %247 = vmatpush1.msra.mxu0 %v83
    %248 = vmatprep.subr.mxu0 %v86
    %249 = vmatpush1.msra.mxu0 %v85
    %250 = vmatprep.subr.mxu0 %v88
    %251 = vmatpush1.msra.mxu0 %v87
    %252 = vmatprep.subr.mxu0 %v90
    %253 = vmatpush1.msra.mxu0 %v89
    %254 = vmatprep.subr.mxu0 0.0
    %255 = vmatpush1.msra.mxu0 0.0
    %256 = vmatprep.subr.mxu0 0.0
    %257 = vmatpush1.msra.mxu0 0.0
    %258 = vmatprep.subr.mxu0 0.0
    %259 = vmatpush1.msra.mxu0 0.0
    %260 = vmatprep.subr.mxu0 0.0
    %261 = vmatpush1.msra.mxu0 0.0
    %262 = vmatprep.subr.mxu0 0.0
    %263 = vmatpush1.msra.mxu0 0.0
    %264 = vmatprep.subr.mxu0 0.0
    %265 = vmatpush1.msra.mxu0 0.0
    %266 = vmatprep.subr.mxu0 0.0
    %267 = vmatpush1.msra.mxu0 0.0
    %268 = vmatprep.subr.mxu0 0.0
    %269 = vmatpush1.msra.mxu0 0.0
    %270 = vmatprep.subr.mxu0 0.0
    %271 = vmatpush1.msra.mxu0 0.0
    %272 = vmatprep.subr.mxu0 0.0
    %273 = vmatpush1.msra.mxu0 0.0
    %274 = vmatprep.subr.mxu0 0.0
    %275 = vmatpush1.msra.mxu0 0.0
    %276 = vmatprep.subr.mxu0 0.0
    %277 = vmatpush1.msra.mxu0 0.0
    %278 = vmatprep.subr.mxu0 0.0
    %279 = vmatpush1.msra.mxu0 0.0
    %280 = vmatprep.subr.mxu0 0.0
    %281 = vmatpush1.msra.mxu0 0.0
    %282 = vmatprep.subr.mxu0 0.0
    %283 = vmatpush1.msra.mxu0 0.0
    %284 = vmatprep.subr.mxu0 0.0
    %285 = vmatpush1.msra.mxu0 0.0
    %286 = vmatprep.subr.mxu0 0.0
    %287 = vmatpush1.msra.mxu0 0.0
    %288 = vmatprep.subr.mxu0 0.0
    %289 = vmatpush1.msra.mxu0 0.0
    %290 = vmatprep.subr.mxu0 0.0
    %291 = vmatpush1.msra.mxu0 0.0
    %292 = vmatprep.subr.mxu0 0.0
    %293 = vmatpush1.msra.mxu0 0.0
    %294 = vmatprep.subr.mxu0 0.0
    %295 = vmatpush1.msra.mxu0 0.0
    %296 = vmatprep.subr.mxu0 0.0
    %297 = vmatpush1.msra.mxu0 0.0
    %298 = vmatprep.subr.mxu0 0.0
    %299 = vmatpush1.msra.mxu0 0.0
    %300 = vmatprep.subr.mxu0 0.0
    %301 = vmatpush1.msra.mxu0 0.0
    %302 = vmatprep.mubr.f32.mxu0 0.0
    %303 = vmatmul.mubr.f32.gmra.mrb[0].mxu0 %v236
    %v304 = vpop.f32.mrb[0].mxu0
    %v305 = vadd.f32 %v108, %v304
    %v306 = vpop.f32.mrb[0].mxu0
    %v307 = vadd.f32 %v112, %v306
    %308 = vdwg.mxu0
    %v309 = vxor.u32 %v305, 2147483648
    %v310 = vmul.f32 %v309, 1.442695
    %v311 = vpow.pop %v310
    %v312 = vadd.f32 %v311, 1.0
    %v313 = vrcp.pop %v312
    %v314 = vmul.f32 1.0, %v313
    %v315 = vxor.u32 %v307, 2147483648
    %v316 = vmul.f32 %v315, 1.442695
    %v317 = vpow.pop %v316
    %v318 = vadd.f32 %v317, 1.0
    %v319 = vrcp.pop %v318
    %v320 = vmul.f32 1.0, %v319
    %v321 = vtanh.pop %v307
    %v322 = vmul.f32 %v314, %v226
    %324 = vrot.lane.b32.xlu0 %v321, 64
    %v325 = vpop.permute.xlu0 %324
    %v327 = vmul.f32 %v314, %v325
    %329 = vrot.lane.b32.xlu0 %v327, 64
    %v330 = vpop.permute.xlu0 %329
    %v332 = vadd.f32 %v322, %v330
    %v333 = vtanh.pop %v332
    %335 = vrot.lane.b32.xlu0 %v333, 64
    %v336 = vpop.permute.xlu0 %335
    %v338 = vmul.f32 %v320, %v336
    %339 = vst.msk [vmem:[#allocation2 + $0x8] sm:$0xff] %vm233, %v338
    %v341 = vsel %vm233, %v338, 0
    %343 = vmatprep.subr.mxu0 %v76
    %344 = vmatpush1.msra.mxu0 %v75
    %345 = vmatprep.subr.mxu0 %v78
    %346 = vmatpush1.msra.mxu0 %v77
    %347 = vmatprep.subr.mxu0 %v80
    %348 = vmatpush1.msra.mxu0 %v79
    %349 = vmatprep.subr.mxu0 %v82
    %350 = vmatpush1.msra.mxu0 %v81
    %351 = vmatprep.subr.mxu0 %v84
    %352 = vmatpush1.msra.mxu0 %v83
    %353 = vmatprep.subr.mxu0 %v86
    %354 = vmatpush1.msra.mxu0 %v85
    %355 = vmatprep.subr.mxu0 %v88
    %356 = vmatpush1.msra.mxu0 %v87
    %357 = vmatprep.subr.mxu0 %v90
    %358 = vmatpush1.msra.mxu0 %v89
    %359 = vmatprep.subr.mxu0 0.0
    %360 = vmatpush1.msra.mxu0 0.0
    %361 = vmatprep.subr.mxu0 0.0
    %362 = vmatpush1.msra.mxu0 0.0
    %363 = vmatprep.subr.mxu0 0.0
    %364 = vmatpush1.msra.mxu0 0.0
    %365 = vmatprep.subr.mxu0 0.0
    %366 = vmatpush1.msra.mxu0 0.0
    %367 = vmatprep.subr.mxu0 0.0
    %368 = vmatpush1.msra.mxu0 0.0
    %369 = vmatprep.subr.mxu0 0.0
    %370 = vmatpush1.msra.mxu0 0.0
    %371 = vmatprep.subr.mxu0 0.0
    %372 = vmatpush1.msra.mxu0 0.0
    %373 = vmatprep.subr.mxu0 0.0
    %374 = vmatpush1.msra.mxu0 0.0
    %375 = vmatprep.subr.mxu0 0.0
    %376 = vmatpush1.msra.mxu0 0.0
    %377 = vmatprep.subr.mxu0 0.0
    %378 = vmatpush1.msra.mxu0 0.0
    %379 = vmatprep.subr.mxu0 0.0
    %380 = vmatpush1.msra.mxu0 0.0
    %381 = vmatprep.subr.mxu0 0.0
    %382 = vmatpush1.msra.mxu0 0.0
    %383 = vmatprep.subr.mxu0 0.0
    %384 = vmatpush1.msra.mxu0 0.0
    %385 = vmatprep.subr.mxu0 0.0
    %386 = vmatpush1.msra.mxu0 0.0
    %387 = vmatprep.subr.mxu0 0.0
    %388 = vmatpush1.msra.mxu0 0.0
    %389 = vmatprep.subr.mxu0 0.0
    %390 = vmatpush1.msra.mxu0 0.0
    %391 = vmatprep.subr.mxu0 0.0
    %392 = vmatpush1.msra.mxu0 0.0
    %393 = vmatprep.subr.mxu0 0.0
    %394 = vmatpush1.msra.mxu0 0.0
    %395 = vmatprep.subr.mxu0 0.0
    %396 = vmatpush1.msra.mxu0 0.0
    %397 = vmatprep.subr.mxu0 0.0
    %398 = vmatpush1.msra.mxu0 0.0
    %399 = vmatprep.subr.mxu0 0.0
    %400 = vmatpush1.msra.mxu0 0.0
    %401 = vmatprep.subr.mxu0 0.0
    %402 = vmatpush1.msra.mxu0 0.0
    %403 = vmatprep.subr.mxu0 0.0
    %404 = vmatpush1.msra.mxu0 0.0
    %405 = vmatprep.subr.mxu0 0.0
    %406 = vmatpush1.msra.mxu0 0.0
    %407 = vmatprep.mubr.f32.mxu0 0.0
    %408 = vmatmul.mubr.f32.gmra.mrb[0].mxu0 %v341
    %v409 = vpop.f32.mrb[0].mxu0
    %v410 = vadd.f32 %v108, %v409
    %v411 = vpop.f32.mrb[0].mxu0
    %v412 = vadd.f32 %v112, %v411
    %413 = vdwg.mxu0
    %v414 = vxor.u32 %v410, 2147483648
    %v415 = vmul.f32 %v414, 1.442695
    %v416 = vpow.pop %v415
    %v417 = vadd.f32 %v416, 1.0
    %v418 = vrcp.pop %v417
    %v419 = vmul.f32 1.0, %v418
    %v420 = vxor.u32 %v412, 2147483648
    %v421 = vmul.f32 %v420, 1.442695
    %v422 = vpow.pop %v421
    %v423 = vadd.f32 %v422, 1.0
    %v424 = vrcp.pop %v423
    %v425 = vmul.f32 1.0, %v424
    %v426 = vtanh.pop %v412
    %v427 = vmul.f32 %v419, %v332
    %429 = vrot.lane.b32.xlu0 %v426, 64
    %v430 = vpop.permute.xlu0 %429
    %v432 = vmul.f32 %v419, %v430
    %434 = vrot.lane.b32.xlu0 %v432, 64
    %v435 = vpop.permute.xlu0 %434
    %v437 = vadd.f32 %v427, %v435
    %v438 = vtanh.pop %v437
    %440 = vrot.lane.b32.xlu0 %v438, 64
    %v441 = vpop.permute.xlu0 %440
    %v443 = vmul.f32 %v425, %v441
    %444 = vst.msk [vmem:[#allocation2 + $0x10] sm:$0xff] %vm233, %v443
    %v446 = vsel %vm233, %v443, 0
    %448 = vmatprep.subr.mxu0 %v76
    %449 = vmatpush1.msra.mxu0 %v75
    %450 = vmatprep.subr.mxu0 %v78
    %451 = vmatpush1.msra.mxu0 %v77
    %452 = vmatprep.subr.mxu0 %v80
    %453 = vmatpush1.msra.mxu0 %v79
    %454 = vmatprep.subr.mxu0 %v82
    %455 = vmatpush1.msra.mxu0 %v81
    %456 = vmatprep.subr.mxu0 %v84
    %457 = vmatpush1.msra.mxu0 %v83
    %458 = vmatprep.subr.mxu0 %v86
    %459 = vmatpush1.msra.mxu0 %v85
    %460 = vmatprep.subr.mxu0 %v88
    %461 = vmatpush1.msra.mxu0 %v87
    %462 = vmatprep.subr.mxu0 %v90
    %463 = vmatpush1.msra.mxu0 %v89
    %464 = vmatprep.subr.mxu0 0.0
    %465 = vmatpush1.msra.mxu0 0.0
    %466 = vmatprep.subr.mxu0 0.0
    %467 = vmatpush1.msra.mxu0 0.0
    %468 = vmatprep.subr.mxu0 0.0
    %469 = vmatpush1.msra.mxu0 0.0
    %470 = vmatprep.subr.mxu0 0.0
    %471 = vmatpush1.msra.mxu0 0.0
    %472 = vmatprep.subr.mxu0 0.0
    %473 = vmatpush1.msra.mxu0 0.0
    %474 = vmatprep.subr.mxu0 0.0
    %475 = vmatpush1.msra.mxu0 0.0
    %476 = vmatprep.subr.mxu0 0.0
    %477 = vmatpush1.msra.mxu0 0.0
    %478 = vmatprep.subr.mxu0 0.0
    %479 = vmatpush1.msra.mxu0 0.0
    %480 = vmatprep.subr.mxu0 0.0
    %481 = vmatpush1.msra.mxu0 0.0
    %482 = vmatprep.subr.mxu0 0.0
    %483 = vmatpush1.msra.mxu0 0.0
    %484 = vmatprep.subr.mxu0 0.0
    %485 = vmatpush1.msra.mxu0 0.0
    %486 = vmatprep.subr.mxu0 0.0
    %487 = vmatpush1.msra.mxu0 0.0
    %488 = vmatprep.subr.mxu0 0.0
    %489 = vmatpush1.msra.mxu0 0.0
    %490 = vmatprep.subr.mxu0 0.0
    %491 = vmatpush1.msra.mxu0 0.0
    %492 = vmatprep.subr.mxu0 0.0
    %493 = vmatpush1.msra.mxu0 0.0
    %494 = vmatprep.subr.mxu0 0.0
    %495 = vmatpush1.msra.mxu0 0.0
    %496 = vmatprep.subr.mxu0 0.0
    %497 = vmatpush1.msra.mxu0 0.0
    %498 = vmatprep.subr.mxu0 0.0
    %499 = vmatpush1.msra.mxu0 0.0
    %500 = vmatprep.subr.mxu0 0.0
    %501 = vmatpush1.msra.mxu0 0.0
    %502 = vmatprep.subr.mxu0 0.0
    %503 = vmatpush1.msra.mxu0 0.0
    %504 = vmatprep.subr.mxu0 0.0
    %505 = vmatpush1.msra.mxu0 0.0
    %506 = vmatprep.subr.mxu0 0.0
    %507 = vmatpush1.msra.mxu0 0.0
    %508 = vmatprep.subr.mxu0 0.0
    %509 = vmatpush1.msra.mxu0 0.0
    %510 = vmatprep.subr.mxu0 0.0
    %511 = vmatpush1.msra.mxu0 0.0
    %512 = vmatprep.mubr.f32.mxu0 0.0
    %513 = vmatmul.mubr.f32.gmra.mrb[0].mxu0 %v446
    %v514 = vpop.f32.mrb[0].mxu0
    %v515 = vadd.f32 %v108, %v514
    %v516 = vpop.f32.mrb[0].mxu0
    %v517 = vadd.f32 %v112, %v516
    %518 = vdwg.mxu0
    %v519 = vxor.u32 %v515, 2147483648
    %v520 = vmul.f32 %v519, 1.442695
    %v521 = vpow.pop %v520
    %v522 = vadd.f32 %v521, 1.0
    %v523 = vrcp.pop %v522
    %v524 = vmul.f32 1.0, %v523
    %v525 = vxor.u32 %v517, 2147483648
    %v526 = vmul.f32 %v525, 1.442695
    %v527 = vpow.pop %v526
    %v528 = vadd.f32 %v527, 1.0
    %v529 = vrcp.pop %v528
    %v530 = vmul.f32 1.0, %v529
    %v531 = vtanh.pop %v517
    %v532 = vmul.f32 %v524, %v437
    %534 = vrot.lane.b32.xlu0 %v531, 64
    %v535 = vpop.permute.xlu0 %534
    %v537 = vmul.f32 %v524, %v535
    %539 = vrot.lane.b32.xlu0 %v537, 64
    %v540 = vpop.permute.xlu0 %539
    %v542 = vadd.f32 %v532, %v540
    %v543 = vtanh.pop %v542
    %545 = vrot.lane.b32.xlu0 %v543, 64
    %v546 = vpop.permute.xlu0 %545
    %v548 = vmul.f32 %v530, %v546
    %549 = vst.msk [vmem:[#allocation2 + $0x18] sm:$0xff] %vm233, %v548
    %v551 = vsel %vm233, %v548, 0
    %553 = vmatprep.subr.mxu0 %v76
    %554 = vmatpush1.msra.mxu0 %v75
    %555 = vmatprep.subr.mxu0 %v78
    %556 = vmatpush1.msra.mxu0 %v77
    %557 = vmatprep.subr.mxu0 %v80
    %558 = vmatpush1.msra.mxu0 %v79
    %559 = vmatprep.subr.mxu0 %v82
    %560 = vmatpush1.msra.mxu0 %v81
    %561 = vmatprep.subr.mxu0 %v84
    %562 = vmatpush1.msra.mxu0 %v83
    %563 = vmatprep.subr.mxu0 %v86
    %564 = vmatpush1.msra.mxu0 %v85
    %565 = vmatprep.subr.mxu0 %v88
    %566 = vmatpush1.msra.mxu0 %v87
    %567 = vmatprep.subr.mxu0 %v90
    %568 = vmatpush1.msra.mxu0 %v89
    %569 = vmatprep.subr.mxu0 0.0
    %570 = vmatpush1.msra.mxu0 0.0
    %571 = vmatprep.subr.mxu0 0.0
    %572 = vmatpush1.msra.mxu0 0.0
    %573 = vmatprep.subr.mxu0 0.0
    %574 = vmatpush1.msra.mxu0 0.0
    %575 = vmatprep.subr.mxu0 0.0
    %576 = vmatpush1.msra.mxu0 0.0
    %577 = vmatprep.subr.mxu0 0.0
    %578 = vmatpush1.msra.mxu0 0.0
    %579 = vmatprep.subr.mxu0 0.0
    %580 = vmatpush1.msra.mxu0 0.0
    %581 = vmatprep.subr.mxu0 0.0
    %582 = vmatpush1.msra.mxu0 0.0
    %583 = vmatprep.subr.mxu0 0.0
    %584 = vmatpush1.msra.mxu0 0.0
    %585 = vmatprep.subr.mxu0 0.0
    %586 = vmatpush1.msra.mxu0 0.0
    %587 = vmatprep.subr.mxu0 0.0
    %588 = vmatpush1.msra.mxu0 0.0
    %589 = vmatprep.subr.mxu0 0.0
    %590 = vmatpush1.msra.mxu0 0.0
    %591 = vmatprep.subr.mxu0 0.0
    %592 = vmatpush1.msra.mxu0 0.0
    %593 = vmatprep.subr.mxu0 0.0
    %594 = vmatpush1.msra.mxu0 0.0
    %595 = vmatprep.subr.mxu0 0.0
    %596 = vmatpush1.msra.mxu0 0.0
    %597 = vmatprep.subr.mxu0 0.0
    %598 = vmatpush1.msra.mxu0 0.0
    %599 = vmatprep.subr.mxu0 0.0
    %600 = vmatpush1.msra.mxu0 0.0
    %601 = vmatprep.subr.mxu0 0.0
    %602 = vmatpush1.msra.mxu0 0.0
    %603 = vmatprep.subr.mxu0 0.0
    %604 = vmatpush1.msra.mxu0 0.0
    %605 = vmatprep.subr.mxu0 0.0
    %606 = vmatpush1.msra.mxu0 0.0
    %607 = vmatprep.subr.mxu0 0.0
    %608 = vmatpush1.msra.mxu0 0.0
    %609 = vmatprep.subr.mxu0 0.0
    %610 = vmatpush1.msra.mxu0 0.0
    %611 = vmatprep.subr.mxu0 0.0
    %612 = vmatpush1.msra.mxu0 0.0
    %613 = vmatprep.subr.mxu0 0.0
    %614 = vmatpush1.msra.mxu0 0.0
    %615 = vmatprep.subr.mxu0 0.0
    %616 = vmatpush1.msra.mxu0 0.0
    %617 = vmatprep.mubr.f32.mxu0 0.0
    %618 = vmatmul.mubr.f32.gmra.mrb[0].mxu0 %v551
    %v619 = vpop.f32.mrb[0].mxu0
    %v620 = vadd.f32 %v108, %v619
    %v621 = vpop.f32.mrb[0].mxu0
    %v622 = vadd.f32 %v112, %v621
    %623 = vdwg.mxu0
    %v624 = vxor.u32 %v620, 2147483648
    %v625 = vmul.f32 %v624, 1.442695
    %v626 = vpow.pop %v625
    %v627 = vadd.f32 %v626, 1.0
    %v628 = vrcp.pop %v627
    %v629 = vmul.f32 1.0, %v628
    %v630 = vxor.u32 %v622, 2147483648
    %v631 = vmul.f32 %v630, 1.442695
    %v632 = vpow.pop %v631
    %v633 = vadd.f32 %v632, 1.0
    %v634 = vrcp.pop %v633
    %v635 = vmul.f32 1.0, %v634
    %v636 = vtanh.pop %v622
    %v637 = vmul.f32 %v629, %v542
    %639 = vrot.lane.b32.xlu0 %v636, 64
    %v640 = vpop.permute.xlu0 %639
    %v642 = vmul.f32 %v629, %v640
    %644 = vrot.lane.b32.xlu0 %v642, 64
    %v645 = vpop.permute.xlu0 %644
    %v647 = vadd.f32 %v637, %v645
    %v648 = vtanh.pop %v647
    %650 = vrot.lane.b32.xlu0 %v648, 64
    %v651 = vpop.permute.xlu0 %650
    %v653 = vmul.f32 %v635, %v651
    %654 = vst.msk [vmem:[#allocation2 + $0x20] sm:$0xff] %vm233, %v653
    %v656 = vsel %vm233, %v653, 0
    %658 = vmatprep.subr.mxu0 %v76
    %659 = vmatpush1.msra.mxu0 %v75
    %660 = vmatprep.subr.mxu0 %v78
    %661 = vmatpush1.msra.mxu0 %v77
    %662 = vmatprep.subr.mxu0 %v80
    %663 = vmatpush1.msra.mxu0 %v79
    %664 = vmatprep.subr.mxu0 %v82
    %665 = vmatpush1.msra.mxu0 %v81
    %666 = vmatprep.subr.mxu0 %v84
    %667 = vmatpush1.msra.mxu0 %v83
    %668 = vmatprep.subr.mxu0 %v86
    %669 = vmatpush1.msra.mxu0 %v85
    %670 = vmatprep.subr.mxu0 %v88
    %671 = vmatpush1.msra.mxu0 %v87
    %672 = vmatprep.subr.mxu0 %v90
    %673 = vmatpush1.msra.mxu0 %v89
    %674 = vmatprep.subr.mxu0 0.0
    %675 = vmatpush1.msra.mxu0 0.0
    %676 = vmatprep.subr.mxu0 0.0
    %677 = vmatpush1.msra.mxu0 0.0
    %678 = vmatprep.subr.mxu0 0.0
    %679 = vmatpush1.msra.mxu0 0.0
    %680 = vmatprep.subr.mxu0 0.0
    %681 = vmatpush1.msra.mxu0 0.0
    %682 = vmatprep.subr.mxu0 0.0
    %683 = vmatpush1.msra.mxu0 0.0
    %684 = vmatprep.subr.mxu0 0.0
    %685 = vmatpush1.msra.mxu0 0.0
    %686 = vmatprep.subr.mxu0 0.0
    %687 = vmatpush1.msra.mxu0 0.0
    %688 = vmatprep.subr.mxu0 0.0
    %689 = vmatpush1.msra.mxu0 0.0
    %690 = vmatprep.subr.mxu0 0.0
    %691 = vmatpush1.msra.mxu0 0.0
    %692 = vmatprep.subr.mxu0 0.0
    %693 = vmatpush1.msra.mxu0 0.0
    %694 = vmatprep.subr.mxu0 0.0
    %695 = vmatpush1.msra.mxu0 0.0
    %696 = vmatprep.subr.mxu0 0.0
    %697 = vmatpush1.msra.mxu0 0.0
    %698 = vmatprep.subr.mxu0 0.0
    %699 = vmatpush1.msra.mxu0 0.0
    %700 = vmatprep.subr.mxu0 0.0
    %701 = vmatpush1.msra.mxu0 0.0
    %702 = vmatprep.subr.mxu0 0.0
    %703 = vmatpush1.msra.mxu0 0.0
    %704 = vmatprep.subr.mxu0 0.0
    %705 = vmatpush1.msra.mxu0 0.0
    %706 = vmatprep.subr.mxu0 0.0
    %707 = vmatpush1.msra.mxu0 0.0
    %708 = vmatprep.subr.mxu0 0.0
    %709 = vmatpush1.msra.mxu0 0.0
    %710 = vmatprep.subr.mxu0 0.0
    %711 = vmatpush1.msra.mxu0 0.0
    %712 = vmatprep.subr.mxu0 0.0
    %713 = vmatpush1.msra.mxu0 0.0
    %714 = vmatprep.subr.mxu0 0.0
    %715 = vmatpush1.msra.mxu0 0.0
    %716 = vmatprep.subr.mxu0 0.0
    %717 = vmatpush1.msra.mxu0 0.0
    %718 = vmatprep.subr.mxu0 0.0
    %719 = vmatpush1.msra.mxu0 0.0
    %720 = vmatprep.subr.mxu0 0.0
    %721 = vmatpush1.msra.mxu0 0.0
    %722 = vmatprep.mubr.f32.mxu0 0.0
    %723 = vmatmul.mubr.f32.gmra.mrb[0].mxu0 %v656
    %v724 = vpop.f32.mrb[0].mxu0
    %v725 = vadd.f32 %v108, %v724
    %v726 = vpop.f32.mrb[0].mxu0
    %v727 = vadd.f32 %v112, %v726
    %728 = vdwg.mxu0
    %v729 = vxor.u32 %v725, 2147483648
    %v730 = vmul.f32 %v729, 1.442695
    %v731 = vpow.pop %v730
    %v732 = vadd.f32 %v731, 1.0
    %v733 = vrcp.pop %v732
    %v734 = vmul.f32 1.0, %v733
    %v735 = vxor.u32 %v727, 2147483648
    %v736 = vmul.f32 %v735, 1.442695
    %v737 = vpow.pop %v736
    %v738 = vadd.f32 %v737, 1.0
    %v739 = vrcp.pop %v738
    %v740 = vmul.f32 1.0, %v739
    %v741 = vtanh.pop %v727
    %v742 = vmul.f32 %v734, %v647
    %744 = vrot.lane.b32.xlu0 %v741, 64
    %v745 = vpop.permute.xlu0 %744
    %v747 = vmul.f32 %v734, %v745
    %749 = vrot.lane.b32.xlu0 %v747, 64
    %v750 = vpop.permute.xlu0 %749
    %v752 = vadd.f32 %v742, %v750
    %v753 = vtanh.pop %v752
    %755 = vrot.lane.b32.xlu0 %v753, 64
    %v756 = vpop.permute.xlu0 %755
    %v758 = vmul.f32 %v740, %v756
    %759 = vst.msk [vmem:[#allocation2 + $0x28] sm:$0xff] %vm233, %v758
    %v761 = vsel %vm233, %v758, 0
    %763 = vmatprep.subr.mxu0 %v76
    %764 = vmatpush1.msra.mxu0 %v75
    %765 = vmatprep.subr.mxu0 %v78
    %766 = vmatpush1.msra.mxu0 %v77
    %767 = vmatprep.subr.mxu0 %v80
    %768 = vmatpush1.msra.mxu0 %v79
    %769 = vmatprep.subr.mxu0 %v82
    %770 = vmatpush1.msra.mxu0 %v81
    %771 = vmatprep.subr.mxu0 %v84
    %772 = vmatpush1.msra.mxu0 %v83
    %773 = vmatprep.subr.mxu0 %v86
    %774 = vmatpush1.msra.mxu0 %v85
    %775 = vmatprep.subr.mxu0 %v88
    %776 = vmatpush1.msra.mxu0 %v87
    %777 = vmatprep.subr.mxu0 %v90
    %778 = vmatpush1.msra.mxu0 %v89
    %779 = vmatprep.subr.mxu0 0.0
    %780 = vmatpush1.msra.mxu0 0.0
    %781 = vmatprep.subr.mxu0 0.0
    %782 = vmatpush1.msra.mxu0 0.0
    %783 = vmatprep.subr.mxu0 0.0
    %784 = vmatpush1.msra.mxu0 0.0
    %785 = vmatprep.subr.mxu0 0.0
    %786 = vmatpush1.msra.mxu0 0.0
    %787 = vmatprep.subr.mxu0 0.0
    %788 = vmatpush1.msra.mxu0 0.0
    %789 = vmatprep.subr.mxu0 0.0
    %790 = vmatpush1.msra.mxu0 0.0
    %791 = vmatprep.subr.mxu0 0.0
    %792 = vmatpush1.msra.mxu0 0.0
    %793 = vmatprep.subr.mxu0 0.0
    %794 = vmatpush1.msra.mxu0 0.0
    %795 = vmatprep.subr.mxu0 0.0
    %796 = vmatpush1.msra.mxu0 0.0
    %797 = vmatprep.subr.mxu0 0.0
    %798 = vmatpush1.msra.mxu0 0.0
    %799 = vmatprep.subr.mxu0 0.0
    %800 = vmatpush1.msra.mxu0 0.0
    %801 = vmatprep.subr.mxu0 0.0
    %802 = vmatpush1.msra.mxu0 0.0
    %803 = vmatprep.subr.mxu0 0.0
    %804 = vmatpush1.msra.mxu0 0.0
    %805 = vmatprep.subr.mxu0 0.0
    %806 = vmatpush1.msra.mxu0 0.0
    %807 = vmatprep.subr.mxu0 0.0
    %808 = vmatpush1.msra.mxu0 0.0
    %809 = vmatprep.subr.mxu0 0.0
    %810 = vmatpush1.msra.mxu0 0.0
    %811 = vmatprep.subr.mxu0 0.0
    %812 = vmatpush1.msra.mxu0 0.0
    %813 = vmatprep.subr.mxu0 0.0
    %814 = vmatpush1.msra.mxu0 0.0
    %815 = vmatprep.subr.mxu0 0.0
    %816 = vmatpush1.msra.mxu0 0.0
    %817 = vmatprep.subr.mxu0 0.0
    %818 = vmatpush1.msra.mxu0 0.0
    %819 = vmatprep.subr.mxu0 0.0
    %820 = vmatpush1.msra.mxu0 0.0
    %821 = vmatprep.subr.mxu0 0.0
    %822 = vmatpush1.msra.mxu0 0.0
    %823 = vmatprep.subr.mxu0 0.0
    %824 = vmatpush1.msra.mxu0 0.0
    %825 = vmatprep.subr.mxu0 0.0
    %826 = vmatpush1.msra.mxu0 0.0
    %827 = vmatprep.mubr.f32.mxu0 0.0
    %828 = vmatmul.mubr.f32.gmra.mrb[0].mxu0 %v761
    %v829 = vpop.f32.mrb[0].mxu0
    %v830 = vadd.f32 %v108, %v829
    %v831 = vpop.f32.mrb[0].mxu0
    %v832 = vadd.f32 %v112, %v831
    %833 = vdwg.mxu0
    %v834 = vxor.u32 %v830, 2147483648
    %v835 = vmul.f32 %v834, 1.442695
    %v836 = vpow.pop %v835
    %v837 = vadd.f32 %v836, 1.0
    %v838 = vrcp.pop %v837
    %v839 = vmul.f32 1.0, %v838
    %v840 = vxor.u32 %v832, 2147483648
    %v841 = vmul.f32 %v840, 1.442695
    %v842 = vpow.pop %v841
    %v843 = vadd.f32 %v842, 1.0
    %v844 = vrcp.pop %v843
    %v845 = vmul.f32 1.0, %v844
    %v846 = vtanh.pop %v832
    %v847 = vmul.f32 %v839, %v752
    %849 = vrot.lane.b32.xlu0 %v846, 64
    %v850 = vpop.permute.xlu0 %849
    %v852 = vmul.f32 %v839, %v850
    %854 = vrot.lane.b32.xlu0 %v852, 64
    %v855 = vpop.permute.xlu0 %854
    %v857 = vadd.f32 %v847, %v855
    %v858 = vtanh.pop %v857
    %860 = vrot.lane.b32.xlu0 %v858, 64
    %v861 = vpop.permute.xlu0 %860
    %v863 = vmul.f32 %v845, %v861
    %864 = vst.msk [vmem:[#allocation2 + $0x30] sm:$0xff] %vm233, %v863
    %v866 = vsel %vm233, %v863, 0
    %868 = vmatprep.subr.mxu0 %v76
    %869 = vmatpush1.msra.mxu0 %v75
    %870 = vmatprep.subr.mxu0 %v78
    %871 = vmatpush1.msra.mxu0 %v77
    %872 = vmatprep.subr.mxu0 %v80
    %873 = vmatpush1.msra.mxu0 %v79
    %874 = vmatprep.subr.mxu0 %v82
    %875 = vmatpush1.msra.mxu0 %v81
    %876 = vmatprep.subr.mxu0 %v84
    %877 = vmatpush1.msra.mxu0 %v83
    %878 = vmatprep.subr.mxu0 %v86
    %879 = vmatpush1.msra.mxu0 %v85
    %880 = vmatprep.subr.mxu0 %v88
    %881 = vmatpush1.msra.mxu0 %v87
    %882 = vmatprep.subr.mxu0 %v90
    %883 = vmatpush1.msra.mxu0 %v89
    %884 = vmatprep.subr.mxu0 0.0
    %885 = vmatpush1.msra.mxu0 0.0
    %886 = vmatprep.subr.mxu0 0.0
    %887 = vmatpush1.msra.mxu0 0.0
    %888 = vmatprep.subr.mxu0 0.0
    %889 = vmatpush1.msra.mxu0 0.0
    %890 = vmatprep.subr.mxu0 0.0
    %891 = vmatpush1.msra.mxu0 0.0
    %892 = vmatprep.subr.mxu0 0.0
    %893 = vmatpush1.msra.mxu0 0.0
    %894 = vmatprep.subr.mxu0 0.0
    %895 = vmatpush1.msra.mxu0 0.0
    %896 = vmatprep.subr.mxu0 0.0
    %897 = vmatpush1.msra.mxu0 0.0
    %898 = vmatprep.subr.mxu0 0.0
    %899 = vmatpush1.msra.mxu0 0.0
    %900 = vmatprep.subr.mxu0 0.0
    %901 = vmatpush1.msra.mxu0 0.0
    %902 = vmatprep.subr.mxu0 0.0
    %903 = vmatpush1.msra.mxu0 0.0
    %904 = vmatprep.subr.mxu0 0.0
    %905 = vmatpush1.msra.mxu0 0.0
    %906 = vmatprep.subr.mxu0 0.0
    %907 = vmatpush1.msra.mxu0 0.0
    %908 = vmatprep.subr.mxu0 0.0
    %909 = vmatpush1.msra.mxu0 0.0
    %910 = vmatprep.subr.mxu0 0.0
    %911 = vmatpush1.msra.mxu0 0.0
    %912 = vmatprep.subr.mxu0 0.0
    %913 = vmatpush1.msra.mxu0 0.0
    %914 = vmatprep.subr.mxu0 0.0
    %915 = vmatpush1.msra.mxu0 0.0
    %916 = vmatprep.subr.mxu0 0.0
    %917 = vmatpush1.msra.mxu0 0.0
    %918 = vmatprep.subr.mxu0 0.0
    %919 = vmatpush1.msra.mxu0 0.0
    %920 = vmatprep.subr.mxu0 0.0
    %921 = vmatpush1.msra.mxu0 0.0
    %922 = vmatprep.subr.mxu0 0.0
    %923 = vmatpush1.msra.mxu0 0.0
    %924 = vmatprep.subr.mxu0 0.0
    %925 = vmatpush1.msra.mxu0 0.0
    %926 = vmatprep.subr.mxu0 0.0
    %927 = vmatpush1.msra.mxu0 0.0
    %928 = vmatprep.subr.mxu0 0.0
    %929 = vmatpush1.msra.mxu0 0.0
    %930 = vmatprep.subr.mxu0 0.0
    %931 = vmatpush1.msra.mxu0 0.0
    %932 = vmatprep.mubr.f32.mxu0 0.0
    %933 = vmatmul.mubr.f32.gmra.mrb[0].mxu0 %v866
    %v934 = vpop.f32.mrb[0].mxu0
    %v935 = vadd.f32 %v108, %v934
    %v936 = vpop.f32.mrb[0].mxu0
    %v937 = vadd.f32 %v112, %v936
    %938 = vdwg.mxu0
    %v939 = vxor.u32 %v935, 2147483648
    %v940 = vmul.f32 %v939, 1.442695
    %v941 = vpow.pop %v940
    %v942 = vadd.f32 %v941, 1.0
    %v943 = vrcp.pop %v942
    %v944 = vmul.f32 1.0, %v943
    %v945 = vxor.u32 %v937, 2147483648
    %v946 = vmul.f32 %v945, 1.442695
    %v947 = vpow.pop %v946
    %v948 = vadd.f32 %v947, 1.0
    %v949 = vrcp.pop %v948
    %v950 = vmul.f32 1.0, %v949
    %v951 = vtanh.pop %v937
    %v952 = vmul.f32 %v944, %v857
    %954 = vrot.lane.b32.xlu0 %v951, 64
    %v955 = vpop.permute.xlu0 %954
    %v957 = vmul.f32 %v944, %v955
    %959 = vrot.lane.b32.xlu0 %v957, 64
    %v960 = vpop.permute.xlu0 %959
    %v962 = vadd.f32 %v952, %v960
    %v963 = vtanh.pop %v962
    %965 = vrot.lane.b32.xlu0 %v963, 64
    %v966 = vpop.permute.xlu0 %965
    %v968 = vmul.f32 %v950, %v966
    %969 = vst.msk [vmem:[#allocation2 + $0x38] sm:$0xff] %vm233, %v968
    %v970 = vld [vmem:[#allocation2] sm:$0xff]
    %v971 = vld [vmem:[#allocation2 + $0x8] sm:$0xff]
    %v972 = vld [vmem:[#allocation2 + $0x10] sm:$0xff]
    %v973 = vld [vmem:[#allocation2 + $0x18] sm:$0xff]
    %v974 = vld [vmem:[#allocation2 + $0x20] sm:$0xff]
    %v975 = vld [vmem:[#allocation2 + $0x28] sm:$0xff]
    %v976 = vld [vmem:[#allocation2 + $0x30] sm:$0xff]
    %v977 = vld [vmem:[#allocation2 + $0x38] sm:$0xff]
    %v978 = vld [vmem:[%s6] sm:$0xff]
    %v979 = vld [vmem:[%s6 + $0x8] sm:$0xff]
    %v980 = vld [vmem:[%s6 + $0x10] sm:$0xff]
    %v981 = vld [vmem:[%s6 + $0x18] sm:$0xff]
    %v982 = vld [vmem:[%s6 + $0x20] sm:$0xff]
    %v983 = vld [vmem:[%s6 + $0x28] sm:$0xff]
    %v984 = vld [vmem:[%s6 + $0x30] sm:$0xff]
    %v985 = vld [vmem:[%s6 + $0x38] sm:$0xff]
    %v986 = vld [vmem:[%s7] sm:$0x1]
    %v988 = vlaneseq
    %v989 = vshrl.u32 %v988, 7
    %v990 = vsub.s32 0, %v989
    %v991 = vrot.slane %v986, %v990
    %v994 = vsel %vm233, %v970, 0
    %v997 = vsel %vm233, %v971, 0
    %v1000 = vsel %vm233, %v972, 0
    %v1003 = vsel %vm233, %v973, 0
    %v1006 = vsel %vm233, %v974, 0
    %v1009 = vsel %vm233, %v975, 0
    %v1012 = vsel %vm233, %v976, 0
    %v1015 = vsel %vm233, %v977, 0
    %1017 = vmatprep.subr.mxu0 0.0
    %1018 = vmatpush1.msra.mxu0 %v978
    %1019 = vmatprep.subr.mxu0 0.0
    %1020 = vmatpush1.msra.mxu0 %v979
    %1021 = vmatprep.subr.mxu0 0.0
    %1022 = vmatpush1.msra.mxu0 %v980
    %1023 = vmatprep.subr.mxu0 0.0
    %1024 = vmatpush1.msra.mxu0 %v981
    %1025 = vmatprep.subr.mxu0 0.0
    %1026 = vmatpush1.msra.mxu0 %v982
    %1027 = vmatprep.subr.mxu0 0.0
    %1028 = vmatpush1.msra.mxu0 %v983
    %1029 = vmatprep.subr.mxu0 0.0
    %1030 = vmatpush1.msra.mxu0 %v984
    %1031 = vmatprep.subr.mxu0 0.0
    %1032 = vmatpush1.msra.mxu0 %v985
    %1033 = vmatprep.subr.mxu0 0.0
    %1034 = vmatpush1.msra.mxu0 0.0
    %1035 = vmatprep.subr.mxu0 0.0
    %1036 = vmatpush1.msra.mxu0 0.0
    %1037 = vmatprep.subr.mxu0 0.0
    %1038 = vmatpush1.msra.mxu0 0.0
    %1039 = vmatprep.subr.mxu0 0.0
    %1040 = vmatpush1.msra.mxu0 0.0
    %1041 = vmatprep.subr.mxu0 0.0
    %1042 = vmatpush1.msra.mxu0 0.0
    %1043 = vmatprep.subr.mxu0 0.0
    %1044 = vmatpush1.msra.mxu0 0.0
    %1045 = vmatprep.subr.mxu0 0.0
    %1046 = vmatpush1.msra.mxu0 0.0
    %1047 = vmatprep.subr.mxu0 0.0
    %1048 = vmatpush1.msra.mxu0 0.0
    %1049 = vmatprep.subr.mxu0 0.0
    %1050 = vmatpush1.msra.mxu0 0.0
    %1051 = vmatprep.subr.mxu0 0.0
    %1052 = vmatpush1.msra.mxu0 0.0
    %1053 = vmatprep.subr.mxu0 0.0
    %1054 = vmatpush1.msra.mxu0 0.0
    %1055 = vmatprep.subr.mxu0 0.0
    %1056 = vmatpush1.msra.mxu0 0.0
    %1057 = vmatprep.subr.mxu0 0.0
    %1058 = vmatpush1.msra.mxu0 0.0
    %1059 = vmatprep.subr.mxu0 0.0
    %1060 = vmatpush1.msra.mxu0 0.0
    %1061 = vmatprep.subr.mxu0 0.0
    %1062 = vmatpush1.msra.mxu0 0.0
    %1063 = vmatprep.subr.mxu0 0.0
    %1064 = vmatpush1.msra.mxu0 0.0
    %1065 = vmatprep.subr.mxu0 0.0
    %1066 = vmatpush1.msra.mxu0 0.0
    %1067 = vmatprep.subr.mxu0 0.0
    %1068 = vmatpush1.msra.mxu0 0.0
    %1069 = vmatprep.subr.mxu0 0.0
    %1070 = vmatpush1.msra.mxu0 0.0
    %1071 = vmatprep.subr.mxu0 0.0
    %1072 = vmatpush1.msra.mxu0 0.0
    %1073 = vmatprep.subr.mxu0 0.0
    %1074 = vmatpush1.msra.mxu0 0.0
    %1075 = vmatprep.subr.mxu0 0.0
    %1076 = vmatpush1.msra.mxu0 0.0
    %1077 = vmatprep.subr.mxu0 0.0
    %1078 = vmatpush1.msra.mxu0 0.0
    %1079 = vmatprep.subr.mxu0 0.0
    %1080 = vmatpush1.msra.mxu0 0.0
    %1081 = vmatprep.mubr.f32.mxu0 0.0
    %1082 = vmatmul.mubr.f32.gmra.mrb[0].mxu0 %v994
    %v1083 = vpop.f32.mrb[0].mxu0
    %v1084 = vadd.f32 %v991, %v1083
    %v1085 = vpop.f32.mrb[0].mxu0
    %1086 = vmatprep.mubr.f32.mxu0 0.0
    %1087 = vmatmul.mubr.f32.gmra.mrb[0].mxu0 %v997
    %v1088 = vpop.f32.mrb[0].mxu0
    %v1089 = vadd.f32 %v991, %v1088
    %v1090 = vpop.f32.mrb[0].mxu0
    %1091 = vmatprep.mubr.f32.mxu0 0.0
    %1092 = vmatmul.mubr.f32.gmra.mrb[0].mxu0 %v1000
    %v1093 = vpop.f32.mrb[0].mxu0
    %v1094 = vadd.f32 %v991, %v1093
    %v1095 = vpop.f32.mrb[0].mxu0
    %1096 = vmatprep.mubr.f32.mxu0 0.0
    %1097 = vmatmul.mubr.f32.gmra.mrb[0].mxu0 %v1003
    %v1098 = vpop.f32.mrb[0].mxu0
    %v1099 = vadd.f32 %v991, %v1098
    %v1100 = vpop.f32.mrb[0].mxu0
    %1101 = vmatprep.mubr.f32.mxu0 0.0
    %1102 = vmatmul.mubr.f32.gmra.mrb[0].mxu0 %v1006
    %v1103 = vpop.f32.mrb[0].mxu0
    %v1104 = vadd.f32 %v991, %v1103
    %v1105 = vpop.f32.mrb[0].mxu0
    %1106 = vmatprep.mubr.f32.mxu0 0.0
    %1107 = vmatmul.mubr.f32.gmra.mrb[0].mxu0 %v1009
    %v1108 = vpop.f32.mrb[0].mxu0
    %v1109 = vadd.f32 %v991, %v1108
    %v1110 = vpop.f32.mrb[0].mxu0
    %1111 = vmatprep.mubr.f32.mxu0 0.0
    %1112 = vmatmul.mubr.f32.gmra.mrb[0].mxu0 %v1012
    %v1113 = vpop.f32.mrb[0].mxu0
    %v1114 = vadd.f32 %v991, %v1113
    %v1115 = vpop.f32.mrb[0].mxu0
    %1116 = vmatprep.mubr.f32.mxu0 0.0
    %1117 = vmatmul.mubr.f32.gmra.mrb[0].mxu0 %v1015
    %v1118 = vpop.f32.mrb[0].mxu0
    %v1119 = vadd.f32 %v991, %v1118
    %v1120 = vpop.f32.mrb[0].mxu0
    %1121 = vdwg.mxu0
    %1122 = vst [vmem:[%s8] sm:$0xff] %v1084
    %1123 = vst [vmem:[%s8 + $0x8] sm:$0xff] %v1089
    %1124 = vst [vmem:[%s8 + $0x10] sm:$0xff] %v1094
    %1125 = vst [vmem:[%s8 + $0x18] sm:$0xff] %v1099
    %1126 = vst [vmem:[%s8 + $0x20] sm:$0xff] %v1104
    %1127 = vst [vmem:[%s8 + $0x28] sm:$0xff] %v1109
    %1128 = vst [vmem:[%s8 + $0x30] sm:$0xff] %v1114
    %1129 = vst [vmem:[%s8 + $0x38] sm:$0xff] %v1119
    // Predicated region
    $region42: #{decoder_forward.1} parent=1 // pred_check
      _
    $region43: #{decoder_forward.1} parent=1 // pred_check_branch
      %1131 = sbr.rel (0) target = $region45
    $region44: #{decoder_forward.1} parent=1 // pred_region
      _
    $region45: #{decoder_forward.1} parent=1 // pred_fallthru
      _
    // Predicated region
    $region46: #{decoder_forward.1} parent=1 // pred_check
      _
    $region47: #{decoder_forward.1} parent=1 // pred_check_branch
      %1133 = sbr.rel (0) target = $region49
    $region48: #{decoder_forward.1} parent=1 // pred_region
      _
    $region49: #{decoder_forward.1} parent=1 // pred_fallthru
      _
    %1134 = vsyncpa [#allocation4], 1
    %1135 = vsyncpa [#allocation6], 1

</llo_original>
